<compile_context>
chip_gen: v6e
topology: v6e:2x2x1
jax: 0.10.0
libtpu: 0.0.40
codegen_flags: <defaults>
</compile_context>

<pallas_src>
import functools
import math

import jax
import jax.numpy as jnp
from jax import lax
from jax.experimental import pallas as pl
from jax.experimental.pallas import tpu as pltpu


def _round_up(x, m):
    return (x + m - 1) // m * m


# -----------------------------------------------------------------------------
# Pallas kernel: one (batch, Cout-group) block; whole padded image per step.
# -----------------------------------------------------------------------------
def _coordconv_kernel(x_ref, w_ref, pb_ref, o_ref, *, k, wp):
    # x_ref : (1, Cin, Nin)       zero-padded image, flattened (h*Wp + w) lanes
    # w_ref : (k*k, Coutg, Cin)   conv weight taps (kh*k + kw major)
    # pb_ref: (Coutg, Nout)       positional bias = coord-channel conv + bias
    # o_ref : (1, Coutg, Nout)
    n_out = pb_ref.shape[-1]
    acc = pb_ref[...]                                   # f32 accumulator
    for kh in range(k):
        for kw in range(k):
            shift = kh * wp + kw                        # flattened tap offset
            tap = x_ref[0, :, pl.ds(shift, n_out)]      # (Cin, Nout)
            acc = acc + jnp.dot(w_ref[kh * k + kw], tap,
                                preferred_element_type=jnp.float32)
    o_ref[0] = acc.astype(o_ref.dtype)


# -----------------------------------------------------------------------------
# Plain-JAX glue (coords, positional bias, padding, params)
# -----------------------------------------------------------------------------
def _coord_channels(h, w, dtype):
    """AddCoords channels in NCHW, shape (1, 2, H, W).

    Matches the torch module: xx varies along H, yy along W, both in [-1, 1].
    Note: H == 1 or W == 1 divides by zero (inf/NaN), exactly like torch.
    """
    xx = 2.0 * jnp.arange(h, dtype=dtype) / (h - 1) - 1.0
    yy = 2.0 * jnp.arange(w, dtype=dtype) / (w - 1) - 1.0
    xx = jnp.broadcast_to(xx[:, None], (h, w))
    yy = jnp.broadcast_to(yy[None, :], (h, w))
    return jnp.stack([xx, yy], axis=0)[None]            # (1, 2, H, W)


def init_params(key, in_channels, out_channels, k=3):
    """Deterministic synthetic init matching nn.Conv2d(in_channels+2, out, k)."""
    kw, kb = jax.random.split(key)
    fan_in = (in_channels + 2) * k * k
    bound = 1.0 / math.sqrt(fan_in)
    weight = jax.random.uniform(kw, (out_channels, in_channels + 2, k, k),
                                jnp.float32, -bound, bound)
    bias = jax.random.uniform(kb, (out_channels,), jnp.float32, -bound, bound)
    return weight, bias


# -----------------------------------------------------------------------------
# CoordConv forward
# -----------------------------------------------------------------------------
def coord_conv(x_nchw, weight, bias, *, kernel_size=3, stride=1, padding=1,
               compute_dtype=jnp.bfloat16, out_dtype=None,
               vmem_budget_bytes=40 * 1024 * 1024):
    """CoordConv: AddCoords + Conv2d(Cin+2, Cout, k, stride=s, padding=p).

    x_nchw: (B, Cin, H, W)  weight: (Cout, Cin+2, k, k)  bias: (Cout,)
    Returns (B, Cout, Ho, Wo) in NCHW (dtype = out_dtype or x.dtype).
    """
    B, Cin, H, W = x_nchw.shape
    Cout = weight.shape[0]
    k, s, p = kernel_size, stride, padding
    assert weight.shape == (Cout, Cin + 2, k, k), weight.shape
    out_dtype = x_nchw.dtype if out_dtype is None else out_dtype
    f32 = jnp.float32

    Hp, Wp = H + 2 * p, W + 2 * p
    Hf, Wf = Hp - k + 1, Wp - k + 1                 # stride-1 (full) output grid
    Ho = (H + 2 * p - k) // s + 1
    Wo = (W + 2 * p - k) // s + 1

    # Lane geometry: padded image flattened to one lane axis, so the conv tap
    # (kh, kw) is a constant lane shift of kh*Wp + kw.
    n_flat = Hp * Wp
    n_out = _round_up(n_flat, 128)
    max_shift = (k - 1) * Wp + (k - 1)
    n_in = _round_up(n_out + max_shift, 128)

    # Conv weight: real input channels -> (k*k, Cout, Cin) taps; the two coord
    # channels are folded (with the conv bias) into a positional bias below.
    w_in = weight[:, :Cin]
    w_coord = weight[:, Cin:Cin + 2].astype(f32)
    w_taps = jnp.transpose(w_in, (2, 3, 0, 1)).reshape(k * k, Cout, Cin)
    w_taps = w_taps.astype(compute_dtype)

    # Positional bias on the stride-1 full grid, padded & flattened exactly like
    # the kernel output.  Input-independent: in a network this is computed once
    # per (H, W) and reused; it stays VMEM-resident inside the kernel.
    coords = _coord_channels(H, W, f32)                          # (1, 2, H, W)
    pos_bias = lax.conv_general_dilated(
        coords, w_coord, (1, 1), [(p, p), (p, p)],
        dimension_numbers=("NCHW", "OIHW", "NCHW"))[0]           # (Cout, Hf, Wf)
    pos_bias = pos_bias + bias.astype(f32)[:, None, None]
    pos_bias = jnp.pad(pos_bias, ((0, 0), (0, Hp - Hf), (0, Wp - Wf)))
    pos_bias = jnp.pad(pos_bias.reshape(Cout, n_flat),
                       ((0, 0), (0, n_out - n_flat)))            # (Cout, Nout)

    # Raw padded input: cast to compute dtype *before* any expansion, flatten,
    # lane-pad.  ~1.3x of the raw input — replaces the 9x im2col slab.
    xp = jnp.pad(x_nchw.astype(compute_dtype),
                 ((0, 0), (0, 0), (p, p), (p, p)))
    xflat = jnp.pad(xp.reshape(B, Cin, n_flat),
                    ((0, 0), (0, 0), (0, n_in - n_flat)))        # (B, Cin, Nin)

    # Grid: (batch, Cout groups).  Split Cout only when B == 1 so v7x megacore
    # still gets >= 2 parallel steps (groups must stay multiples of 8 sublanes).
    cout_g, n_cg = Cout, 1
    if B == 1 and Cout % 16 == 0:
        cout_g, n_cg = Cout // 2, 2

    # VMEM footprint (double-buffered blocks + f32 accumulator) and limit,
    # computed from the real dtypes.  40 MiB default budget is v7x-safe; raise
    # vmem_budget_bytes on the 128 MiB v5e/v6e parts for very large images.
    cbytes = jnp.dtype(compute_dtype).itemsize
    obytes = jnp.dtype(out_dtype).itemsize
    footprint = (2 * (Cin * n_in * cbytes
                      + k * k * Cout * Cin * cbytes
                      + Cout * n_out * 4
                      + cout_g * n_out * obytes)
                 + cout_g * n_out * 4)
    if footprint > vmem_budget_bytes:
        # TODO(synk): lane-tiled / manual-DMA halo path for images whose padded
        # plane does not fit a single VMEM block.
        raise ValueError(
            f"CoordConv single-block VMEM footprint {footprint} B exceeds the "
            f"budget {vmem_budget_bytes} B; image too large for this kernel.")
    vmem_limit = int(min(96 << 20, max(footprint + (8 << 20), 32 << 20)))

    kernel = functools.partial(_coordconv_kernel, k=k, wp=Wp)
    out_p = pl.pallas_call(
        kernel,
        out_shape=jax.ShapeDtypeStruct((B, Cout, n_out), out_dtype),
        grid=(B, n_cg),
        in_specs=[
            # Padded image: constant along the inner axis -> fetched once per b.
            pl.BlockSpec((1, Cin, n_in), lambda b, cg: (b, 0, 0)),
            # Weight taps and positional bias: VMEM-resident.
            pl.BlockSpec((k * k, cout_g, Cin), lambda b, cg: (0, cg, 0)),
            pl.BlockSpec((cout_g, n_out), lambda b, cg: (cg, 0)),
        ],
        out_specs=pl.BlockSpec((1, cout_g, n_out), lambda b, cg: (b, cg, 0)),
        compiler_params=pltpu.CompilerParams(
            dimension_semantics=("parallel", "parallel"),
            vmem_limit_bytes=vmem_limit),
    )(xflat, w_taps, pos_bias)

    # Padded-flat -> NCHW.  Stride > 1 is handled by subsampling the stride-1
    # output (correct; wasteful — see TODO at top for a dedicated path).
    out_full = out_p[:, :, :n_flat].reshape(B, Cout, Hp, Wp)
    return out_full[:, :, :(Ho - 1) * s + 1:s, :(Wo - 1) * s + 1:s]


# -----------------------------------------------------------------------------
# Pure-JAX reference (for correctness check)
# -----------------------------------------------------------------------------
def coord_conv_ref(x_nchw, weight, bias, *, kernel_size=3, stride=1, padding=1):
    B, Cin, H, W = x_nchw.shape
    coords = jnp.broadcast_to(_coord_channels(H, W, x_nchw.dtype), (B, 2, H, W))
    xin = jnp.concatenate([x_nchw, coords.astype(x_nchw.dtype)], axis=1)
    y = lax.conv_general_dilated(
        xin, weight, (stride, stride),
        [(padding, padding), (padding, padding)],
        dimension_numbers=("NCHW", "OIHW", "NCHW"))
    return y + bias[None, :, None, None]


# -----------------------------------------------------------------------------
if __name__ == "__main__":
    B, Cin, Cout, H, W = 2, 4, 8, 16, 16

    key = jax.random.PRNGKey(0)
    kx, kp = jax.random.split(key)
    x = jax.random.normal(kx, (B, Cin, H, W), jnp.float32)   # NCHW, PyTorch-style
    weight, bias = init_params(kp, Cin, Cout, k=3)

    ref = jax.block_until_ready(coord_conv_ref(x, weight, bias))

    # f32 MXU path (tight check).
    out_f32 = jax.block_until_ready(
        coord_conv(x, weight, bias, compute_dtype=jnp.float32))
    assert out_f32.shape == (B, Cout, H, W), out_f32.shape
    err = float(jnp.max(jnp.abs(out_f32 - ref)))
    assert jnp.allclose(out_f32, ref, atol=1e-4, rtol=1e-4), err

    # Default path: bf16 matmul operands, f32 accumulation/epilogue, f32 output.
    out_bf16 = jax.block_until_ready(coord_conv(x, weight, bias))
    assert out_bf16.shape == (B, Cout, H, W), out_bf16.shape
    err_bf16 = float(jnp.max(jnp.abs(out_bf16 - ref)))
    assert jnp.allclose(out_bf16, ref, atol=5e-2, rtol=5e-2), err_bf16

    # Reduced-precision writeback: bf16 output.
    out_bf16o = jax.block_until_ready(
        coord_conv(x, weight, bias, out_dtype=jnp.bfloat16))
    assert out_bf16o.dtype == jnp.bfloat16
    err_bf16o = float(jnp.max(jnp.abs(out_bf16o.astype(jnp.float32) - ref)))
    assert jnp.allclose(out_bf16o.astype(jnp.float32), ref,
                        atol=2e-1, rtol=2e-1), err_bf16o

    print("KERNEL_OK")
</pallas_src>

<mosaic_0001>
module attributes {stable_mosaic.version = 11 : i64} {
  func.func @_coordconv_kernel(%arg0: i32, %arg1: i32, %arg2: memref<1x4x512xf32, #tpu.memory_space<vmem>>, %arg3: memref<9x8x4xf32, #tpu.memory_space<vmem>>, %arg4: memref<8x384xf32, #tpu.memory_space<vmem>>, %arg5: memref<1x8x384xf32, #tpu.memory_space<vmem>>) attributes {dimension_semantics = [#tpu.dimension_semantics<parallel>, #tpu.dimension_semantics<parallel>], iteration_bounds = array<i64: 2, 1>, scalar_prefetch = 0 : i64, scratch_operands = 0 : i64, tpu.core_type = #tpu.core_type<tc>, window_params = [{transform_indices = @transform_0, window_bounds = array<i64: 1, 4, 512>}, {transform_indices = @transform_1, window_bounds = array<i64: 9, 8, 4>}, {transform_indices = @transform_2, window_bounds = array<i64: 8, 384>}, {transform_indices = @transform_3, window_bounds = array<i64: 1, 8, 384>}]} {
    %c0 = arith.constant 0 : index
    %c0_0 = arith.constant 0 : index
    %0 = vector.load %arg4[%c0, %c0_0] : memref<8x384xf32, #tpu.memory_space<vmem>>, vector<8x384xf32>
    %c0_1 = arith.constant 0 : index
    %c0_2 = arith.constant 0 : index
    %c0_3 = arith.constant 0 : index
    %1 = vector.load %arg2[%c0_1, %c0_2, %c0_3] : memref<1x4x512xf32, #tpu.memory_space<vmem>>, vector<1x4x384xf32>
    %2 = vector.shape_cast %1 : vector<1x4x384xf32> to vector<4x384xf32>
    %c0_4 = arith.constant 0 : index
    %c0_5 = arith.constant 0 : index
    %c0_6 = arith.constant 0 : index
    %3 = vector.load %arg3[%c0_4, %c0_5, %c0_6] : memref<9x8x4xf32, #tpu.memory_space<vmem>>, vector<1x8x4xf32>
    %4 = vector.shape_cast %3 : vector<1x8x4xf32> to vector<8x4xf32>
    %cst = arith.constant dense<0.000000e+00> : vector<8x384xf32>
    %5 = tpu.matmul %4, %2, %cst {dimension_numbers = #tpu.dot_dimension_numbers<[1], [0], [0], [1], [0, 0, 1, 1], [], []>} : vector<8x4xf32>, vector<4x384xf32>, vector<8x384xf32> -> vector<8x384xf32>
    %6 = arith.addf %0, %5 : vector<8x384xf32>
    %c0_7 = arith.constant 0 : index
    %c0_8 = arith.constant 0 : index
    %c1 = arith.constant 1 : index
    %7 = vector.load %arg2[%c0_7, %c0_8, %c1] : memref<1x4x512xf32, #tpu.memory_space<vmem>>, vector<1x4x384xf32>
    %8 = vector.shape_cast %7 : vector<1x4x384xf32> to vector<4x384xf32>
    %c1_9 = arith.constant 1 : index
    %c0_10 = arith.constant 0 : index
    %c0_11 = arith.constant 0 : index
    %9 = vector.load %arg3[%c1_9, %c0_10, %c0_11] : memref<9x8x4xf32, #tpu.memory_space<vmem>>, vector<1x8x4xf32>
    %10 = vector.shape_cast %9 : vector<1x8x4xf32> to vector<8x4xf32>
    %cst_12 = arith.constant dense<0.000000e+00> : vector<8x384xf32>
    %11 = tpu.matmul %10, %8, %cst_12 {dimension_numbers = #tpu.dot_dimension_numbers<[1], [0], [0], [1], [0, 0, 1, 1], [], []>} : vector<8x4xf32>, vector<4x384xf32>, vector<8x384xf32> -> vector<8x384xf32>
    %12 = arith.addf %6, %11 : vector<8x384xf32>
    %c0_13 = arith.constant 0 : index
    %c0_14 = arith.constant 0 : index
    %c2 = arith.constant 2 : index
    %13 = vector.load %arg2[%c0_13, %c0_14, %c2] : memref<1x4x512xf32, #tpu.memory_space<vmem>>, vector<1x4x384xf32>
    %14 = vector.shape_cast %13 : vector<1x4x384xf32> to vector<4x384xf32>
    %c2_15 = arith.constant 2 : index
    %c0_16 = arith.constant 0 : index
    %c0_17 = arith.constant 0 : index
    %15 = vector.load %arg3[%c2_15, %c0_16, %c0_17] : memref<9x8x4xf32, #tpu.memory_space<vmem>>, vector<1x8x4xf32>
    %16 = vector.shape_cast %15 : vector<1x8x4xf32> to vector<8x4xf32>
    %cst_18 = arith.constant dense<0.000000e+00> : vector<8x384xf32>
    %17 = tpu.matmul %16, %14, %cst_18 {dimension_numbers = #tpu.dot_dimension_numbers<[1], [0], [0], [1], [0, 0, 1, 1], [], []>} : vector<8x4xf32>, vector<4x384xf32>, vector<8x384xf32> -> vector<8x384xf32>
    %18 = arith.addf %12, %17 : vector<8x384xf32>
    %c0_19 = arith.constant 0 : index
    %c0_20 = arith.constant 0 : index
    %c18 = arith.constant 18 : index
    %19 = vector.load %arg2[%c0_19, %c0_20, %c18] : memref<1x4x512xf32, #tpu.memory_space<vmem>>, vector<1x4x384xf32>
    %20 = vector.shape_cast %19 : vector<1x4x384xf32> to vector<4x384xf32>
    %c3 = arith.constant 3 : index
    %c0_21 = arith.constant 0 : index
    %c0_22 = arith.constant 0 : index
    %21 = vector.load %arg3[%c3, %c0_21, %c0_22] : memref<9x8x4xf32, #tpu.memory_space<vmem>>, vector<1x8x4xf32>
    %22 = vector.shape_cast %21 : vector<1x8x4xf32> to vector<8x4xf32>
    %cst_23 = arith.constant dense<0.000000e+00> : vector<8x384xf32>
    %23 = tpu.matmul %22, %20, %cst_23 {dimension_numbers = #tpu.dot_dimension_numbers<[1], [0], [0], [1], [0, 0, 1, 1], [], []>} : vector<8x4xf32>, vector<4x384xf32>, vector<8x384xf32> -> vector<8x384xf32>
    %24 = arith.addf %18, %23 : vector<8x384xf32>
    %c0_24 = arith.constant 0 : index
    %c0_25 = arith.constant 0 : index
    %c19 = arith.constant 19 : index
    %25 = vector.load %arg2[%c0_24, %c0_25, %c19] : memref<1x4x512xf32, #tpu.memory_space<vmem>>, vector<1x4x384xf32>
    %26 = vector.shape_cast %25 : vector<1x4x384xf32> to vector<4x384xf32>
    %c4 = arith.constant 4 : index
    %c0_26 = arith.constant 0 : index
    %c0_27 = arith.constant 0 : index
    %27 = vector.load %arg3[%c4, %c0_26, %c0_27] : memref<9x8x4xf32, #tpu.memory_space<vmem>>, vector<1x8x4xf32>
    %28 = vector.shape_cast %27 : vector<1x8x4xf32> to vector<8x4xf32>
    %cst_28 = arith.constant dense<0.000000e+00> : vector<8x384xf32>
    %29 = tpu.matmul %28, %26, %cst_28 {dimension_numbers = #tpu.dot_dimension_numbers<[1], [0], [0], [1], [0, 0, 1, 1], [], []>} : vector<8x4xf32>, vector<4x384xf32>, vector<8x384xf32> -> vector<8x384xf32>
    %30 = arith.addf %24, %29 : vector<8x384xf32>
    %c0_29 = arith.constant 0 : index
    %c0_30 = arith.constant 0 : index
    %c20 = arith.constant 20 : index
    %31 = vector.load %arg2[%c0_29, %c0_30, %c20] : memref<1x4x512xf32, #tpu.memory_space<vmem>>, vector<1x4x384xf32>
    %32 = vector.shape_cast %31 : vector<1x4x384xf32> to vector<4x384xf32>
    %c5 = arith.constant 5 : index
    %c0_31 = arith.constant 0 : index
    %c0_32 = arith.constant 0 : index
    %33 = vector.load %arg3[%c5, %c0_31, %c0_32] : memref<9x8x4xf32, #tpu.memory_space<vmem>>, vector<1x8x4xf32>
    %34 = vector.shape_cast %33 : vector<1x8x4xf32> to vector<8x4xf32>
    %cst_33 = arith.constant dense<0.000000e+00> : vector<8x384xf32>
    %35 = tpu.matmul %34, %32, %cst_33 {dimension_numbers = #tpu.dot_dimension_numbers<[1], [0], [0], [1], [0, 0, 1, 1], [], []>} : vector<8x4xf32>, vector<4x384xf32>, vector<8x384xf32> -> vector<8x384xf32>
    %36 = arith.addf %30, %35 : vector<8x384xf32>
    %c0_34 = arith.constant 0 : index
    %c0_35 = arith.constant 0 : index
    %c36 = arith.constant 36 : index
    %37 = vector.load %arg2[%c0_34, %c0_35, %c36] : memref<1x4x512xf32, #tpu.memory_space<vmem>>, vector<1x4x384xf32>
    %38 = vector.shape_cast %37 : vector<1x4x384xf32> to vector<4x384xf32>
    %c6 = arith.constant 6 : index
    %c0_36 = arith.constant 0 : index
    %c0_37 = arith.constant 0 : index
    %39 = vector.load %arg3[%c6, %c0_36, %c0_37] : memref<9x8x4xf32, #tpu.memory_space<vmem>>, vector<1x8x4xf32>
    %40 = vector.shape_cast %39 : vector<1x8x4xf32> to vector<8x4xf32>
    %cst_38 = arith.constant dense<0.000000e+00> : vector<8x384xf32>
    %41 = tpu.matmul %40, %38, %cst_38 {dimension_numbers = #tpu.dot_dimension_numbers<[1], [0], [0], [1], [0, 0, 1, 1], [], []>} : vector<8x4xf32>, vector<4x384xf32>, vector<8x384xf32> -> vector<8x384xf32>
    %42 = arith.addf %36, %41 : vector<8x384xf32>
    %c0_39 = arith.constant 0 : index
    %c0_40 = arith.constant 0 : index
    %c37 = arith.constant 37 : index
    %43 = vector.load %arg2[%c0_39, %c0_40, %c37] : memref<1x4x512xf32, #tpu.memory_space<vmem>>, vector<1x4x384xf32>
    %44 = vector.shape_cast %43 : vector<1x4x384xf32> to vector<4x384xf32>
    %c7 = arith.constant 7 : index
    %c0_41 = arith.constant 0 : index
    %c0_42 = arith.constant 0 : index
    %45 = vector.load %arg3[%c7, %c0_41, %c0_42] : memref<9x8x4xf32, #tpu.memory_space<vmem>>, vector<1x8x4xf32>
    %46 = vector.shape_cast %45 : vector<1x8x4xf32> to vector<8x4xf32>
    %cst_43 = arith.constant dense<0.000000e+00> : vector<8x384xf32>
    %47 = tpu.matmul %46, %44, %cst_43 {dimension_numbers = #tpu.dot_dimension_numbers<[1], [0], [0], [1], [0, 0, 1, 1], [], []>} : vector<8x4xf32>, vector<4x384xf32>, vector<8x384xf32> -> vector<8x384xf32>
    %48 = arith.addf %42, %47 : vector<8x384xf32>
    %c0_44 = arith.constant 0 : index
    %c0_45 = arith.constant 0 : index
    %c38 = arith.constant 38 : index
    %49 = vector.load %arg2[%c0_44, %c0_45, %c38] : memref<1x4x512xf32, #tpu.memory_space<vmem>>, vector<1x4x384xf32>
    %50 = vector.shape_cast %49 : vector<1x4x384xf32> to vector<4x384xf32>
    %c8 = arith.constant 8 : index
    %c0_46 = arith.constant 0 : index
    %c0_47 = arith.constant 0 : index
    %51 = vector.load %arg3[%c8, %c0_46, %c0_47] : memref<9x8x4xf32, #tpu.memory_space<vmem>>, vector<1x8x4xf32>
    %52 = vector.shape_cast %51 : vector<1x8x4xf32> to vector<8x4xf32>
    %cst_48 = arith.constant dense<0.000000e+00> : vector<8x384xf32>
    %53 = tpu.matmul %52, %50, %cst_48 {dimension_numbers = #tpu.dot_dimension_numbers<[1], [0], [0], [1], [0, 0, 1, 1], [], []>} : vector<8x4xf32>, vector<4x384xf32>, vector<8x384xf32> -> vector<8x384xf32>
    %54 = arith.addf %48, %53 : vector<8x384xf32>
    %c0_49 = arith.constant 0 : index
    %c0_50 = arith.constant 0 : index
    %c0_51 = arith.constant 0 : index
    %55 = vector.load %arg5[%c0_49, %c0_50, %c0_51] : memref<1x8x384xf32, #tpu.memory_space<vmem>>, vector<1x8x384xf32>
    %56 = vector.shape_cast %55 : vector<1x8x384xf32> to vector<8x384xf32>
    %57 = vector.shape_cast %54 : vector<8x384xf32> to vector<1x8x384xf32>
    tpu.vector_store %arg5[%c0_49, %c0_50, %c0_51], %57 {strides = array<i32>} : memref<1x8x384xf32, #tpu.memory_space<vmem>>, vector<1x8x384xf32>,
    return
  }
  func.func @transform_0(%arg0: i32, %arg1: i32) -> (i32, i32, i32) {
    %c0_i32 = arith.constant 0 : i32
    %c0_i32_0 = arith.constant 0 : i32
    %c0_i32_1 = arith.constant 0 : i32
    return %arg0, %c0_i32, %c0_i32_0 : i32, i32, i32
  }
  func.func @transform_1(%arg0: i32, %arg1: i32) -> (i32, i32, i32) {
    %c0_i32 = arith.constant 0 : i32
    %c0_i32_0 = arith.constant 0 : i32
    %c0_i32_1 = arith.constant 0 : i32
    return %c0_i32, %arg1, %c0_i32_0 : i32, i32, i32
  }
  func.func @transform_2(%arg0: i32, %arg1: i32) -> (i32, i32) {
    %c0_i32 = arith.constant 0 : i32
    %c0_i32_0 = arith.constant 0 : i32
    return %arg1, %c0_i32 : i32, i32
  }
  func.func @transform_3(%arg0: i32, %arg1: i32) -> (i32, i32, i32) {
    %c0_i32 = arith.constant 0 : i32
    %c0_i32_0 = arith.constant 0 : i32
    return %arg0, %arg1, %c0_i32 : i32, i32, i32
  }
}

</mosaic_0001>

<llo_original>
// kernel: tpu_custom_call.1
$region0: #{tpu_custom_call.1}
  #allocation0 [shape = 'u32[]', space=smem, size = 0x4, offset = 0x4, fixed_abs, tag = 'smem constant byte address 0x4 - core index']
  #allocation1 [shape = 'u32[144,128]{1,0:T(1,128)}', space=vmem, size = 0x12000, scoped, tag = 'internal scratch']
  %s0 = inlined_call_operand.vmem [shape: f32[2,4,512], index: 0, kind: input, shape index: {}]
  %s1 = inlined_call_operand.vmem [shape: f32[9,8,4], index: 1, kind: input, shape index: {}]
  %s2 = inlined_call_operand.vmem [shape: f32[8,384], index: 2, kind: input, shape index: {}]
  %s3 = inlined_call_operand.hbm [shape: f32[2,8,384], index: 3, kind: output, shape index: {}]
  %s4 = sld [smem:[#allocation0]]
  $region45: #{tpu_custom_call.1} parent=0
    _
  %s6 = ssub.s32 1, %s4
  %s7 = scalar_select 0, %s6, %s4
  $region1: #{tpu_custom_call.1} parent=0
    #allocation2 [shape = 'u8[24576]{0}', space=vmem, size = 0x6000, scoped, tag = 'output window, operand 0']
    #allocation3 [shape = 's32[2]{0}', space=sflag, size = 0x8, scoped, tag = 'scoped memory for tpu_custom_call.1']
    %8 = vsyncpa [#allocation3], 0
    %s9 = scalar_lea.sflag [#allocation3], 1
    %10 = vsyncpa %s9, 0
    loop: start=0, step=1, limit=4
    $region2: #{tpu_custom_call.1} parent=1 // loop_pre_header
      _
    $region3: #{tpu_custom_call.1} parent=1 // loop_header
      %s12 = sphi 0, %s16
      %p13 = scmp.ge.s32.totalorder %s12, 4
      %s19 = sphi 0, %s31
      %s20 = sphi 0, %s27
      %s21 = sphi 0, %s19
      %s22 = sphi 0, %s20
      %s23 = sphi 0, %s21
      %s24 = sphi 0, %s22
      %s34 = sphi 0, %s36
      %s37 = sphi 0, %s34
      %s38 = sphi 0, %s37
      %s54 = sphi 0, %s38
      %s60 = sphi 0, %s62
      %s63 = sphi 0, %s60
      %s64 = sphi 0, %s63
      %s80 = sphi 0, %s64
      %s86 = sphi 0, %s88
      %s89 = sphi 0, %s86
      %s90 = sphi 0, %s89
      %s106 = sphi 0, %s90
      %s114 = sphi 0, %s116
      %s117 = sphi 0, %s114
      %s118 = sphi 0, %s117
      %s134 = sphi 0, %s118
    $region4: #{tpu_custom_call.1} parent=1 // loop_header_branch
      %15 = sbr.rel (%p13) target = $region8
    $region5: #{tpu_custom_call.1} parent=1 // loop_body
      %s17 = ssub.s32 %s12, 1
      %s18 = ssub.s32 %s12, 2
      %s25 = sadd.s32 1, %s20
      %p26 = scmp.ge.s32.totalorder %s25, 1
      %s27 = scalar_select %p26, 0, %s25
      %s28 = sadd.s32 1, %s19
      %s29 = scalar_select %p26, %s28, %s19
      %p30 = scmp.ge.s32.totalorder %s29, 2
      %s31 = scalar_select %p30, 0, %s29
      %s32 = ssub.s32 %s19, %s31
      %p33 = scmp.eq.s32.totalorder %s32, 0
      %s35 = sadd.s32 %s34, 1
      %s36 = scalar_select %p33, %s34, %s35
      %p39 = pneg %p33
      %p40 = scmp.eq.s32.totalorder %s12, 1
      %p41 = por %p39, %p40
      %p42 = scmp.ne.s32.totalorder %s34, %s37
      %p43 = scmp.eq.s32.totalorder %s12, 0
      %p44 = por %p42, %p43
      %p45 = scmp.ne.s32.totalorder %s34, %s37
      %p46 = scmp.eq.s32.totalorder %s17, 1
      %p47 = por %p45, %p46
      %p48 = scmp.ne.s32.totalorder %s37, %s38
      %p49 = scmp.eq.s32.totalorder %s17, 0
      %p50 = por %p48, %p49
      %p51 = scmp.ne.s32.totalorder %s37, %s38
      %p52 = scmp.eq.s32.totalorder %s18, 1
      %p53 = por %p51, %p52
      %p55 = scmp.ne.s32.totalorder %s38, %s54
      %p56 = scmp.eq.s32.totalorder %s18, 0
      %p57 = por %p55, %p56
      %s58 = ssub.s32 %s20, %s27
      %p59 = scmp.eq.s32.totalorder %s58, 0
      %s61 = sadd.s32 %s60, 1
      %s62 = scalar_select %p59, %s60, %s61
      %p65 = pneg %p59
      %p66 = scmp.eq.s32.totalorder %s12, 1
      %p67 = por %p65, %p66
      %p68 = scmp.ne.s32.totalorder %s60, %s63
      %p69 = scmp.eq.s32.totalorder %s12, 0
      %p70 = por %p68, %p69
      %p71 = scmp.ne.s32.totalorder %s60, %s63
      %p72 = scmp.eq.s32.totalorder %s17, 1
      %p73 = por %p71, %p72
      %p74 = scmp.ne.s32.totalorder %s63, %s64
      %p75 = scmp.eq.s32.totalorder %s17, 0
      %p76 = por %p74, %p75
      %p77 = scmp.ne.s32.totalorder %s63, %s64
      %p78 = scmp.eq.s32.totalorder %s18, 1
      %p79 = por %p77, %p78
      %p81 = scmp.ne.s32.totalorder %s64, %s80
      %p82 = scmp.eq.s32.totalorder %s18, 0
      %p83 = por %p81, %p82
      %s84 = ssub.s32 %s20, %s27
      %p85 = scmp.eq.s32.totalorder %s84, 0
      %s87 = sadd.s32 %s86, 1
      %s88 = scalar_select %p85, %s86, %s87
      %p91 = pneg %p85
      %p92 = scmp.eq.s32.totalorder %s12, 1
      %p93 = por %p91, %p92
      %p94 = scmp.ne.s32.totalorder %s86, %s89
      %p95 = scmp.eq.s32.totalorder %s12, 0
      %p96 = por %p94, %p95
      %p97 = scmp.ne.s32.totalorder %s86, %s89
      %p98 = scmp.eq.s32.totalorder %s17, 1
      %p99 = por %p97, %p98
      %p100 = scmp.ne.s32.totalorder %s89, %s90
      %p101 = scmp.eq.s32.totalorder %s17, 0
      %p102 = por %p100, %p101
      %p103 = scmp.ne.s32.totalorder %s89, %s90
      %p104 = scmp.eq.s32.totalorder %s18, 1
      %p105 = por %p103, %p104
      %p107 = scmp.ne.s32.totalorder %s90, %s106
      %p108 = scmp.eq.s32.totalorder %s18, 0
      %p109 = por %p107, %p108
      %s110 = ssub.s32 %s19, %s31
      %s111 = ssub.s32 %s20, %s27
      %s112 = sor.u32 %s110, %s111
      %p113 = scmp.eq.s32.totalorder %s112, 0
      %s115 = sadd.s32 %s114, 1
      %s116 = scalar_select %p113, %s114, %s115
      %p119 = pneg %p113
      %p120 = scmp.eq.s32.totalorder %s12, 1
      %p121 = por %p119, %p120
      %p122 = scmp.ne.s32.totalorder %s114, %s117
      %p123 = scmp.eq.s32.totalorder %s12, 0
      %p124 = por %p122, %p123
      %p125 = scmp.ne.s32.totalorder %s114, %s117
      %p126 = scmp.eq.s32.totalorder %s17, 1
      %p127 = por %p125, %p126
      %p128 = scmp.ne.s32.totalorder %s117, %s118
      %p129 = scmp.eq.s32.totalorder %s17, 0
      %p130 = por %p128, %p129
      %p131 = scmp.ne.s32.totalorder %s117, %s118
      %p132 = scmp.eq.s32.totalorder %s18, 1
      %p133 = por %p131, %p132
      %p135 = scmp.ne.s32.totalorder %s118, %s134
      %p136 = scmp.eq.s32.totalorder %s18, 0
      %p137 = por %p135, %p136
      %p138 = scmp.le.s32.totalorder 1, %s12
      %p139 = scmp.lt.s32.totalorder %s12, 3
      %p140 = pnand %p138, %p139
      %p141 = pneg %p140
      // Predicated region
      $region9: #{tpu_custom_call.1} parent=5 // pred_check
        _
      $region10: #{tpu_custom_call.1} parent=5 // pred_check_branch
        %143 = sbr.rel (%p140) target = $region12
      $region11: #{tpu_custom_call.1} parent=5 // pred_region
        %s144 = ssub.s32 %s12, 1
        // Predicated region
        $region13: #{tpu_custom_call.1} parent=11 // pred_check
          %p145 = pneg %p76
        $region14: #{tpu_custom_call.1} parent=11 // pred_check_branch
          %147 = sbr.rel (%p145) target = $region16
        $region15: #{tpu_custom_call.1} parent=11 // pred_region
          %p148 = scmp.lt.s32.totalorder %s22, 0
          %s149 = scalar_select %p148, %s22, 0
          %s150 = smul.addr %s149, 8
          %s151 = scalar_lea.vmem %s1, %s150
        $region16: #{tpu_custom_call.1} parent=11 // pred_fallthru
          _
        // Predicated region
        $region17: #{tpu_custom_call.1} parent=11 // pred_check
          %p152 = pneg %p102
        $region18: #{tpu_custom_call.1} parent=11 // pred_check_branch
          %154 = sbr.rel (%p152) target = $region20
        $region19: #{tpu_custom_call.1} parent=11 // pred_region
          %p155 = scmp.lt.s32.totalorder %s22, 0
          %s156 = scalar_select %p155, %s22, 0
          %s157 = smul.addr %s156, 3
          %s158 = smul.addr %s157, 8
          %s159 = scalar_lea.vmem %s2, %s158
        $region20: #{tpu_custom_call.1} parent=11 // pred_fallthru
          _
      $region12: #{tpu_custom_call.1} parent=5 // pred_fallthru
        _
      %p160 = scmp.lt.s32.totalorder %s12, 2
      // Predicated region
      $region21: #{tpu_custom_call.1} parent=5 // pred_check
        %p161 = pneg %p160
      $region22: #{tpu_custom_call.1} parent=5 // pred_check_branch
        %163 = sbr.rel (%p161) target = $region24
      $region23: #{tpu_custom_call.1} parent=5 // pred_region
        // Predicated region
        $region25: #{tpu_custom_call.1} parent=23 // pred_check
          %p164 = pneg %p44
        $region26: #{tpu_custom_call.1} parent=23 // pred_check_branch
          %166 = sbr.rel (%p164) target = $region28
        $region27: #{tpu_custom_call.1} parent=23 // pred_region
          %p167 = scmp.lt.s32.totalorder %s19, 1
          %s168 = scalar_select %p167, %s19, 1
          %s169 = smul.addr %s168, 4
          %s170 = smul.addr %s169, 4
          %s171 = scalar_lea.vmem %s0, %s170
        $region28: #{tpu_custom_call.1} parent=23 // pred_fallthru
          _
      $region24: #{tpu_custom_call.1} parent=5 // pred_fallthru
        _
      %p172 = scmp.le.s32.totalorder 1, %s12
      %p173 = scmp.lt.s32.totalorder %s12, 3
      %p174 = pnand %p172, %p173
      %p175 = pneg %p174
      // Predicated region
      $region29: #{tpu_custom_call.1} parent=5 // pred_check
        _
      $region30: #{tpu_custom_call.1} parent=5 // pred_check_branch
        %177 = sbr.rel (%p174) target = $region32
      $region31: #{tpu_custom_call.1} parent=5 // pred_region
        %s178 = ssub.s32 %s12, 1
        %p179 = scmp.lt.s32.totalorder %s21, 1
        %s180 = scalar_select %p179, %s21, 1
        %s181 = smul.addr %s180, 4
        %s182 = smul.addr %s181, 4
        %s183 = scalar_lea.vmem %s0, %s182
        %p184 = pneg %p50
        %p185 = pneg %p47
        %p186 = scmp.lt.s32.totalorder %s22, 0
        %s187 = scalar_select %p186, %s22, 0
        %s188 = smul.addr %s187, 8
        %s189 = scalar_lea.vmem %s1, %s188
        %p190 = pneg %p76
        %p191 = pneg %p73
        %p192 = scmp.lt.s32.totalorder %s22, 0
        %s193 = scalar_select %p192, %s22, 0
        %s194 = smul.addr %s193, 3
        %s195 = smul.addr %s194, 8
        %s196 = scalar_lea.vmem %s2, %s195
        %p197 = pneg %p102
        %p198 = pneg %p99
        %p199 = pneg %p130
        %p200 = pneg %p127
        %s201 = sand.u32 %s117, 1
        %s202 = scalar_lea.sflag [#allocation3], %s201
        %s203 = sand.u32 %s117, 1
        %s204 = smul.addr %s203, 24
        %s205 = scalar_lea.vmem [#allocation2], %s204
        %p206 = scmp.lt.s32.totalorder %s21, 1
        %s207 = scalar_select %p206, %s21, 1
        %s208 = smul.addr %s207, 4
        %s209 = smul.addr %s208, 4
        %s210 = scalar_lea.vmem %s0, %s209
        %p211 = scmp.lt.s32.totalorder %s22, 0
        %s212 = scalar_select %p211, %s22, 0
        %s213 = smul.addr %s212, 8
        %s214 = scalar_lea.vmem %s1, %s213
        %p215 = scmp.lt.s32.totalorder %s22, 0
        %s216 = scalar_select %p215, %s22, 0
        %s217 = smul.addr %s216, 3
        %s218 = smul.addr %s217, 8
        %s219 = scalar_lea.vmem %s2, %s218
        %v220 = vld [vmem:[%s219] sm:$0xff]
        %v221 = vld [vmem:[%s219 + $0x8] sm:$0xff]
        %v222 = vld [vmem:[%s219 + $0x10] sm:$0xff]
        %v223 = vld [vmem:[%s210] sm:$0xff]
        %v224 = vld [vmem:[%s210 + $0x8] sm:$0xf]
        %v225 = vld [vmem:[%s214] sm:$0xff]
        %v228 = vcombine.high %v223, %v223
        %vm229 = vcmask 31744
        %v231 = vsel %vm229, %v225, 0
        %vm233 = vcmask 1043456
        %v234 = vsel %vm233, %v223, 0
        %v236 = vsel %vm233, %v228, 0
        %v238 = vsel %vm233, %v224, 0
        %240 = vmatprep.subr.mxu0 0.0
        %241 = vmatpush1.msra.mxu0 0.0
        %242 = vmatprep.subr.mxu0 0.0
        %243 = vmatpush1.msra.mxu0 0.0
        %244 = vmatprep.subr.mxu0 0.0
        %245 = vmatpush1.msra.mxu0 0.0
        %246 = vmatprep.subr.mxu0 0.0
        %247 = vmatpush1.msra.mxu0 0.0
        %248 = vmatprep.subr.mxu0 0.0
        %249 = vmatpush1.msra.mxu0 0.0
        %250 = vmatprep.subr.mxu0 0.0
        %251 = vmatpush1.msra.mxu0 0.0
        %252 = vmatprep.subr.mxu0 0.0
        %253 = vmatpush1.msra.mxu0 0.0
        %254 = vmatprep.subr.mxu0 0.0
        %255 = vmatpush1.msra.mxu0 0.0
        %256 = vmatprep.subr.mxu0 0.0
        %257 = vmatpush1.msra.mxu0 0.0
        %258 = vmatprep.subr.mxu0 0.0
        %259 = vmatpush1.msra.mxu0 0.0
        %260 = vmatprep.subr.mxu0 0.0
        %261 = vmatpush1.msra.mxu0 0.0
        %262 = vmatprep.subr.mxu0 0.0
        %263 = vmatpush1.msra.mxu0 0.0
        %264 = vmatprep.subr.mxu0 0.0
        %265 = vmatpush1.msra.mxu0 0.0
        %266 = vmatprep.subr.mxu0 0.0
        %267 = vmatpush1.msra.mxu0 0.0
        %268 = vmatprep.subr.mxu0 0.0
        %269 = vmatpush1.msra.mxu0 0.0
        %270 = vmatprep.subr.mxu0 %v236
        %271 = vmatpush1.msra.mxu0 %v234
        %272 = vmatprep.subr.mxu0 0.0
        %273 = vmatpush2.msra.mxu0 0.0
        %274 = vmatprep.subr.mxu0 0.0
        %275 = vmatpush2.msra.mxu0 0.0
        %276 = vmatprep.subr.mxu0 0.0
        %277 = vmatpush2.msra.mxu0 0.0
        %278 = vmatprep.subr.mxu0 0.0
        %279 = vmatpush2.msra.mxu0 0.0
        %280 = vmatprep.subr.mxu0 0.0
        %281 = vmatpush2.msra.mxu0 0.0
        %282 = vmatprep.subr.mxu0 0.0
        %283 = vmatpush2.msra.mxu0 0.0
        %284 = vmatprep.subr.mxu0 0.0
        %285 = vmatpush2.msra.mxu0 0.0
        %286 = vmatprep.subr.mxu0 0.0
        %287 = vmatpush2.msra.mxu0 0.0
        %288 = vmatprep.subr.mxu0 0.0
        %289 = vmatpush2.msra.mxu0 0.0
        %290 = vmatprep.subr.mxu0 0.0
        %291 = vmatpush2.msra.mxu0 0.0
        %292 = vmatprep.subr.mxu0 0.0
        %293 = vmatpush2.msra.mxu0 0.0
        %294 = vmatprep.subr.mxu0 0.0
        %295 = vmatpush2.msra.mxu0 0.0
        %296 = vmatprep.subr.mxu0 0.0
        %297 = vmatpush2.msra.mxu0 0.0
        %298 = vmatprep.subr.mxu0 0.0
        %299 = vmatpush2.msra.mxu0 0.0
        %300 = vmatprep.subr.mxu0 0.0
        %301 = vmatpush2.msra.mxu0 0.0
        %302 = vmatprep.subr.mxu0 0.0
        %303 = vmatpush2.msra.mxu0 0.0
        %304 = vmatprep.mubr.f32.mxu0 0.0
        %305 = vmatmul.mubr.f32.gmra.mxu0 %v231
        %v306 = vpop.f32.mrf.mxu0
        %v307 = vadd.f32 0.0, %v306
        %v308 = vpop.f32.mrf.mxu0
        %v309 = vadd.f32 0.0, %v308
        %310 = vdwg.mxu0
        %311 = vmatprep.subr.mxu0 0.0
        %312 = vmatpush1.msra.mxu0 0.0
        %313 = vmatprep.subr.mxu0 0.0
        %314 = vmatpush1.msra.mxu0 0.0
        %315 = vmatprep.subr.mxu0 0.0
        %316 = vmatpush1.msra.mxu0 0.0
        %317 = vmatprep.subr.mxu0 0.0
        %318 = vmatpush1.msra.mxu0 0.0
        %319 = vmatprep.subr.mxu0 0.0
        %320 = vmatpush1.msra.mxu0 0.0
        %321 = vmatprep.subr.mxu0 0.0
        %322 = vmatpush1.msra.mxu0 0.0
        %323 = vmatprep.subr.mxu0 0.0
        %324 = vmatpush1.msra.mxu0 0.0
        %325 = vmatprep.subr.mxu0 0.0
        %326 = vmatpush1.msra.mxu0 0.0
        %327 = vmatprep.subr.mxu0 0.0
        %328 = vmatpush1.msra.mxu0 0.0
        %329 = vmatprep.subr.mxu0 0.0
        %330 = vmatpush1.msra.mxu0 0.0
        %331 = vmatprep.subr.mxu0 0.0
        %332 = vmatpush1.msra.mxu0 0.0
        %333 = vmatprep.subr.mxu0 0.0
        %334 = vmatpush1.msra.mxu0 0.0
        %335 = vmatprep.subr.mxu0 0.0
        %336 = vmatpush1.msra.mxu0 0.0
        %337 = vmatprep.subr.mxu0 0.0
        %338 = vmatpush1.msra.mxu0 0.0
        %339 = vmatprep.subr.mxu0 0.0
        %340 = vmatpush1.msra.mxu0 0.0
        %341 = vmatprep.subr.mxu0 0.0
        %342 = vmatpush1.msra.mxu0 %v238
        %343 = vmatprep.subr.mxu0 0.0
        %344 = vmatpush2.msra.mxu0 0.0
        %345 = vmatprep.subr.mxu0 0.0
        %346 = vmatpush2.msra.mxu0 0.0
        %347 = vmatprep.subr.mxu0 0.0
        %348 = vmatpush2.msra.mxu0 0.0
        %349 = vmatprep.subr.mxu0 0.0
        %350 = vmatpush2.msra.mxu0 0.0
        %351 = vmatprep.subr.mxu0 0.0
        %352 = vmatpush2.msra.mxu0 0.0
        %353 = vmatprep.subr.mxu0 0.0
        %354 = vmatpush2.msra.mxu0 0.0
        %355 = vmatprep.subr.mxu0 0.0
        %356 = vmatpush2.msra.mxu0 0.0
        %357 = vmatprep.subr.mxu0 0.0
        %358 = vmatpush2.msra.mxu0 0.0
        %359 = vmatprep.subr.mxu0 0.0
        %360 = vmatpush2.msra.mxu0 0.0
        %361 = vmatprep.subr.mxu0 0.0
        %362 = vmatpush2.msra.mxu0 0.0
        %363 = vmatprep.subr.mxu0 0.0
        %364 = vmatpush2.msra.mxu0 0.0
        %365 = vmatprep.subr.mxu0 0.0
        %366 = vmatpush2.msra.mxu0 0.0
        %367 = vmatprep.subr.mxu0 0.0
        %368 = vmatpush2.msra.mxu0 0.0
        %369 = vmatprep.subr.mxu0 0.0
        %370 = vmatpush2.msra.mxu0 0.0
        %371 = vmatprep.subr.mxu0 0.0
        %372 = vmatpush2.msra.mxu0 0.0
        %373 = vmatprep.subr.mxu0 0.0
        %374 = vmatpush2.msra.mxu0 0.0
        %375 = vmatprep.mubr.f32.mxu0 0.0
        %376 = vmatmul.mubr.f32.gmra.mxu0 %v231
        %v377 = vpop.f32.mrf.mxu0
        %v378 = vadd.f32 0.0, %v377
        %v379 = vpop.f32.mrf.mxu0
        %380 = vdwg.mxu0
        %v381 = vadd.f32 %v220, %v307
        %v382 = vadd.f32 %v221, %v309
        %v383 = vadd.f32 %v222, %v378
        %v384 = vld [vmem:[%s210] sm:$0xff]
        %v385 = vld [vmem:[%s210 + $0x8] sm:$0xff]
        %s386 = scalar_lea.vmem %s214, 8
        %v387 = vld [vmem:[%s386] sm:$0xff]
        %v390 = vcombine.high %v384, %v384
        %v391 = vcombine.high %v385, %v385
        %392 = vrot.lane.b32.xlu0 %v384, 127
        %v393 = vpop.permute.xlu0 %392
        %394 = vrot.lane.b32.xlu0 %v390, 127
        %v395 = vpop.permute.xlu0 %394
        %396 = vrot.lane.b32.xlu0 %v385, 127
        %v397 = vpop.permute.xlu0 %396
        %398 = vrot.lane.b32.xlu0 %v391, 127
        %v399 = vpop.permute.xlu0 %398
        %vm400 = vcmask 1039360
        %v401 = vsel %vm400, %v393, %v395
        %v402 = vsel %vm400, %v395, %v397
        %v403 = vsel %vm400, %v397, %v399
        %v405 = vsel %vm229, %v387, 0
        %v407 = vsel %vm233, %v401, 0
        %v409 = vsel %vm233, %v402, 0
        %v411 = vsel %vm233, %v403, 0
        %413 = vmatprep.subr.mxu0 0.0
        %414 = vmatpush1.msra.mxu0 0.0
        %415 = vmatprep.subr.mxu0 0.0
        %416 = vmatpush1.msra.mxu0 0.0
        %417 = vmatprep.subr.mxu0 0.0
        %418 = vmatpush1.msra.mxu0 0.0
        %419 = vmatprep.subr.mxu0 0.0
        %420 = vmatpush1.msra.mxu0 0.0
        %421 = vmatprep.subr.mxu0 0.0
        %422 = vmatpush1.msra.mxu0 0.0
        %423 = vmatprep.subr.mxu0 0.0
        %424 = vmatpush1.msra.mxu0 0.0
        %425 = vmatprep.subr.mxu0 0.0
        %426 = vmatpush1.msra.mxu0 0.0
        %427 = vmatprep.subr.mxu0 0.0
        %428 = vmatpush1.msra.mxu0 0.0
        %429 = vmatprep.subr.mxu0 0.0
        %430 = vmatpush1.msra.mxu0 0.0
        %431 = vmatprep.subr.mxu0 0.0
        %432 = vmatpush1.msra.mxu0 0.0
        %433 = vmatprep.subr.mxu0 0.0
        %434 = vmatpush1.msra.mxu0 0.0
        %435 = vmatprep.subr.mxu0 0.0
        %436 = vmatpush1.msra.mxu0 0.0
        %437 = vmatprep.subr.mxu0 0.0
        %438 = vmatpush1.msra.mxu0 0.0
        %439 = vmatprep.subr.mxu0 0.0
        %440 = vmatpush1.msra.mxu0 0.0
        %441 = vmatprep.subr.mxu0 0.0
        %442 = vmatpush1.msra.mxu0 0.0
        %443 = vmatprep.subr.mxu0 %v409
        %444 = vmatpush1.msra.mxu0 %v407
        %445 = vmatprep.subr.mxu0 0.0
        %446 = vmatpush2.msra.mxu0 0.0
        %447 = vmatprep.subr.mxu0 0.0
        %448 = vmatpush2.msra.mxu0 0.0
        %449 = vmatprep.subr.mxu0 0.0
        %450 = vmatpush2.msra.mxu0 0.0
        %451 = vmatprep.subr.mxu0 0.0
        %452 = vmatpush2.msra.mxu0 0.0
        %453 = vmatprep.subr.mxu0 0.0
        %454 = vmatpush2.msra.mxu0 0.0
        %455 = vmatprep.subr.mxu0 0.0
        %456 = vmatpush2.msra.mxu0 0.0
        %457 = vmatprep.subr.mxu0 0.0
        %458 = vmatpush2.msra.mxu0 0.0
        %459 = vmatprep.subr.mxu0 0.0
        %460 = vmatpush2.msra.mxu0 0.0
        %461 = vmatprep.subr.mxu0 0.0
        %462 = vmatpush2.msra.mxu0 0.0
        %463 = vmatprep.subr.mxu0 0.0
        %464 = vmatpush2.msra.mxu0 0.0
        %465 = vmatprep.subr.mxu0 0.0
        %466 = vmatpush2.msra.mxu0 0.0
        %467 = vmatprep.subr.mxu0 0.0
        %468 = vmatpush2.msra.mxu0 0.0
        %469 = vmatprep.subr.mxu0 0.0
        %470 = vmatpush2.msra.mxu0 0.0
        %471 = vmatprep.subr.mxu0 0.0
        %472 = vmatpush2.msra.mxu0 0.0
        %473 = vmatprep.subr.mxu0 0.0
        %474 = vmatpush2.msra.mxu0 0.0
        %475 = vmatprep.subr.mxu0 0.0
        %476 = vmatpush2.msra.mxu0 0.0
        %477 = vmatprep.mubr.f32.mxu0 0.0
        %478 = vmatmul.mubr.f32.gmra.mxu0 %v405
        %v479 = vpop.f32.mrf.mxu0
        %v480 = vadd.f32 0.0, %v479
        %v481 = vpop.f32.mrf.mxu0
        %v482 = vadd.f32 0.0, %v481
        %483 = vdwg.mxu0
        %484 = vmatprep.subr.mxu0 0.0
        %485 = vmatpush1.msra.mxu0 0.0
        %486 = vmatprep.subr.mxu0 0.0
        %487 = vmatpush1.msra.mxu0 0.0
        %488 = vmatprep.subr.mxu0 0.0
        %489 = vmatpush1.msra.mxu0 0.0
        %490 = vmatprep.subr.mxu0 0.0
        %491 = vmatpush1.msra.mxu0 0.0
        %492 = vmatprep.subr.mxu0 0.0
        %493 = vmatpush1.msra.mxu0 0.0
        %494 = vmatprep.subr.mxu0 0.0
        %495 = vmatpush1.msra.mxu0 0.0
        %496 = vmatprep.subr.mxu0 0.0
        %497 = vmatpush1.msra.mxu0 0.0
        %498 = vmatprep.subr.mxu0 0.0
        %499 = vmatpush1.msra.mxu0 0.0
        %500 = vmatprep.subr.mxu0 0.0
        %501 = vmatpush1.msra.mxu0 0.0
        %502 = vmatprep.subr.mxu0 0.0
        %503 = vmatpush1.msra.mxu0 0.0
        %504 = vmatprep.subr.mxu0 0.0
        %505 = vmatpush1.msra.mxu0 0.0
        %506 = vmatprep.subr.mxu0 0.0
        %507 = vmatpush1.msra.mxu0 0.0
        %508 = vmatprep.subr.mxu0 0.0
        %509 = vmatpush1.msra.mxu0 0.0
        %510 = vmatprep.subr.mxu0 0.0
        %511 = vmatpush1.msra.mxu0 0.0
        %512 = vmatprep.subr.mxu0 0.0
        %513 = vmatpush1.msra.mxu0 0.0
        %514 = vmatprep.subr.mxu0 0.0
        %515 = vmatpush1.msra.mxu0 %v411
        %516 = vmatprep.subr.mxu0 0.0
        %517 = vmatpush2.msra.mxu0 0.0
        %518 = vmatprep.subr.mxu0 0.0
        %519 = vmatpush2.msra.mxu0 0.0
        %520 = vmatprep.subr.mxu0 0.0
        %521 = vmatpush2.msra.mxu0 0.0
        %522 = vmatprep.subr.mxu0 0.0
        %523 = vmatpush2.msra.mxu0 0.0
        %524 = vmatprep.subr.mxu0 0.0
        %525 = vmatpush2.msra.mxu0 0.0
        %526 = vmatprep.subr.mxu0 0.0
        %527 = vmatpush2.msra.mxu0 0.0
        %528 = vmatprep.subr.mxu0 0.0
        %529 = vmatpush2.msra.mxu0 0.0
        %530 = vmatprep.subr.mxu0 0.0
        %531 = vmatpush2.msra.mxu0 0.0
        %532 = vmatprep.subr.mxu0 0.0
        %533 = vmatpush2.msra.mxu0 0.0
        %534 = vmatprep.subr.mxu0 0.0
        %535 = vmatpush2.msra.mxu0 0.0
        %536 = vmatprep.subr.mxu0 0.0
        %537 = vmatpush2.msra.mxu0 0.0
        %538 = vmatprep.subr.mxu0 0.0
        %539 = vmatpush2.msra.mxu0 0.0
        %540 = vmatprep.subr.mxu0 0.0
        %541 = vmatpush2.msra.mxu0 0.0
        %542 = vmatprep.subr.mxu0 0.0
        %543 = vmatpush2.msra.mxu0 0.0
        %544 = vmatprep.subr.mxu0 0.0
        %545 = vmatpush2.msra.mxu0 0.0
        %546 = vmatprep.subr.mxu0 0.0
        %547 = vmatpush2.msra.mxu0 0.0
        %548 = vmatprep.mubr.f32.mxu0 0.0
        %549 = vmatmul.mubr.f32.gmra.mxu0 %v405
        %v550 = vpop.f32.mrf.mxu0
        %v551 = vadd.f32 0.0, %v550
        %v552 = vpop.f32.mrf.mxu0
        %553 = vdwg.mxu0
        %v554 = vadd.f32 %v381, %v480
        %v555 = vadd.f32 %v382, %v482
        %v556 = vadd.f32 %v383, %v551
        %v557 = vld [vmem:[%s210] sm:$0xff]
        %v558 = vld [vmem:[%s210 + $0x8] sm:$0xff]
        %s559 = scalar_lea.vmem %s214, 16
        %v560 = vld [vmem:[%s559] sm:$0xff]
        %v563 = vcombine.high %v557, %v557
        %v564 = vcombine.high %v558, %v558
        %565 = vrot.lane.b32.xlu0 %v557, 126
        %v566 = vpop.permute.xlu0 %565
        %567 = vrot.lane.b32.xlu0 %v563, 126
        %v568 = vpop.permute.xlu0 %567
        %569 = vrot.lane.b32.xlu0 %v558, 126
        %v570 = vpop.permute.xlu0 %569
        %571 = vrot.lane.b32.xlu0 %v564, 126
        %v572 = vpop.permute.xlu0 %571
        %vm573 = vcmask 1031168
        %v574 = vsel %vm573, %v566, %v568
        %v575 = vsel %vm573, %v568, %v570
        %v576 = vsel %vm573, %v570, %v572
        %v578 = vsel %vm229, %v560, 0
        %v580 = vsel %vm233, %v574, 0
        %v582 = vsel %vm233, %v575, 0
        %v584 = vsel %vm233, %v576, 0
        %586 = vmatprep.subr.mxu0 0.0
        %587 = vmatpush1.msra.mxu0 0.0
        %588 = vmatprep.subr.mxu0 0.0
        %589 = vmatpush1.msra.mxu0 0.0
        %590 = vmatprep.subr.mxu0 0.0
        %591 = vmatpush1.msra.mxu0 0.0
        %592 = vmatprep.subr.mxu0 0.0
        %593 = vmatpush1.msra.mxu0 0.0
        %594 = vmatprep.subr.mxu0 0.0
        %595 = vmatpush1.msra.mxu0 0.0
        %596 = vmatprep.subr.mxu0 0.0
        %597 = vmatpush1.msra.mxu0 0.0
        %598 = vmatprep.subr.mxu0 0.0
        %599 = vmatpush1.msra.mxu0 0.0
        %600 = vmatprep.subr.mxu0 0.0
        %601 = vmatpush1.msra.mxu0 0.0
        %602 = vmatprep.subr.mxu0 0.0
        %603 = vmatpush1.msra.mxu0 0.0
        %604 = vmatprep.subr.mxu0 0.0
        %605 = vmatpush1.msra.mxu0 0.0
        %606 = vmatprep.subr.mxu0 0.0
        %607 = vmatpush1.msra.mxu0 0.0
        %608 = vmatprep.subr.mxu0 0.0
        %609 = vmatpush1.msra.mxu0 0.0
        %610 = vmatprep.subr.mxu0 0.0
        %611 = vmatpush1.msra.mxu0 0.0
        %612 = vmatprep.subr.mxu0 0.0
        %613 = vmatpush1.msra.mxu0 0.0
        %614 = vmatprep.subr.mxu0 0.0
        %615 = vmatpush1.msra.mxu0 0.0
        %616 = vmatprep.subr.mxu0 %v582
        %617 = vmatpush1.msra.mxu0 %v580
        %618 = vmatprep.subr.mxu0 0.0
        %619 = vmatpush2.msra.mxu0 0.0
        %620 = vmatprep.subr.mxu0 0.0
        %621 = vmatpush2.msra.mxu0 0.0
        %622 = vmatprep.subr.mxu0 0.0
        %623 = vmatpush2.msra.mxu0 0.0
        %624 = vmatprep.subr.mxu0 0.0
        %625 = vmatpush2.msra.mxu0 0.0
        %626 = vmatprep.subr.mxu0 0.0
        %627 = vmatpush2.msra.mxu0 0.0
        %628 = vmatprep.subr.mxu0 0.0
        %629 = vmatpush2.msra.mxu0 0.0
        %630 = vmatprep.subr.mxu0 0.0
        %631 = vmatpush2.msra.mxu0 0.0
        %632 = vmatprep.subr.mxu0 0.0
        %633 = vmatpush2.msra.mxu0 0.0
        %634 = vmatprep.subr.mxu0 0.0
        %635 = vmatpush2.msra.mxu0 0.0
        %636 = vmatprep.subr.mxu0 0.0
        %637 = vmatpush2.msra.mxu0 0.0
        %638 = vmatprep.subr.mxu0 0.0
        %639 = vmatpush2.msra.mxu0 0.0
        %640 = vmatprep.subr.mxu0 0.0
        %641 = vmatpush2.msra.mxu0 0.0
        %642 = vmatprep.subr.mxu0 0.0
        %643 = vmatpush2.msra.mxu0 0.0
        %644 = vmatprep.subr.mxu0 0.0
        %645 = vmatpush2.msra.mxu0 0.0
        %646 = vmatprep.subr.mxu0 0.0
        %647 = vmatpush2.msra.mxu0 0.0
        %648 = vmatprep.subr.mxu0 0.0
        %649 = vmatpush2.msra.mxu0 0.0
        %650 = vmatprep.mubr.f32.mxu0 0.0
        %651 = vmatmul.mubr.f32.gmra.mxu0 %v578
        %v652 = vpop.f32.mrf.mxu0
        %v653 = vadd.f32 0.0, %v652
        %v654 = vpop.f32.mrf.mxu0
        %v655 = vadd.f32 0.0, %v654
        %656 = vdwg.mxu0
        %657 = vmatprep.subr.mxu0 0.0
        %658 = vmatpush1.msra.mxu0 0.0
        %659 = vmatprep.subr.mxu0 0.0
        %660 = vmatpush1.msra.mxu0 0.0
        %661 = vmatprep.subr.mxu0 0.0
        %662 = vmatpush1.msra.mxu0 0.0
        %663 = vmatprep.subr.mxu0 0.0
        %664 = vmatpush1.msra.mxu0 0.0
        %665 = vmatprep.subr.mxu0 0.0
        %666 = vmatpush1.msra.mxu0 0.0
        %667 = vmatprep.subr.mxu0 0.0
        %668 = vmatpush1.msra.mxu0 0.0
        %669 = vmatprep.subr.mxu0 0.0
        %670 = vmatpush1.msra.mxu0 0.0
        %671 = vmatprep.subr.mxu0 0.0
        %672 = vmatpush1.msra.mxu0 0.0
        %673 = vmatprep.subr.mxu0 0.0
        %674 = vmatpush1.msra.mxu0 0.0
        %675 = vmatprep.subr.mxu0 0.0
        %676 = vmatpush1.msra.mxu0 0.0
        %677 = vmatprep.subr.mxu0 0.0
        %678 = vmatpush1.msra.mxu0 0.0
        %679 = vmatprep.subr.mxu0 0.0
        %680 = vmatpush1.msra.mxu0 0.0
        %681 = vmatprep.subr.mxu0 0.0
        %682 = vmatpush1.msra.mxu0 0.0
        %683 = vmatprep.subr.mxu0 0.0
        %684 = vmatpush1.msra.mxu0 0.0
        %685 = vmatprep.subr.mxu0 0.0
        %686 = vmatpush1.msra.mxu0 0.0
        %687 = vmatprep.subr.mxu0 0.0
        %688 = vmatpush1.msra.mxu0 %v584
        %689 = vmatprep.subr.mxu0 0.0
        %690 = vmatpush2.msra.mxu0 0.0
        %691 = vmatprep.subr.mxu0 0.0
        %692 = vmatpush2.msra.mxu0 0.0
        %693 = vmatprep.subr.mxu0 0.0
        %694 = vmatpush2.msra.mxu0 0.0
        %695 = vmatprep.subr.mxu0 0.0
        %696 = vmatpush2.msra.mxu0 0.0
        %697 = vmatprep.subr.mxu0 0.0
        %698 = vmatpush2.msra.mxu0 0.0
        %699 = vmatprep.subr.mxu0 0.0
        %700 = vmatpush2.msra.mxu0 0.0
        %701 = vmatprep.subr.mxu0 0.0
        %702 = vmatpush2.msra.mxu0 0.0
        %703 = vmatprep.subr.mxu0 0.0
        %704 = vmatpush2.msra.mxu0 0.0
        %705 = vmatprep.subr.mxu0 0.0
        %706 = vmatpush2.msra.mxu0 0.0
        %707 = vmatprep.subr.mxu0 0.0
        %708 = vmatpush2.msra.mxu0 0.0
        %709 = vmatprep.subr.mxu0 0.0
        %710 = vmatpush2.msra.mxu0 0.0
        %711 = vmatprep.subr.mxu0 0.0
        %712 = vmatpush2.msra.mxu0 0.0
        %713 = vmatprep.subr.mxu0 0.0
        %714 = vmatpush2.msra.mxu0 0.0
        %715 = vmatprep.subr.mxu0 0.0
        %716 = vmatpush2.msra.mxu0 0.0
        %717 = vmatprep.subr.mxu0 0.0
        %718 = vmatpush2.msra.mxu0 0.0
        %719 = vmatprep.subr.mxu0 0.0
        %720 = vmatpush2.msra.mxu0 0.0
        %721 = vmatprep.mubr.f32.mxu0 0.0
        %722 = vmatmul.mubr.f32.gmra.mxu0 %v578
        %v723 = vpop.f32.mrf.mxu0
        %v724 = vadd.f32 0.0, %v723
        %v725 = vpop.f32.mrf.mxu0
        %726 = vdwg.mxu0
        %v727 = vadd.f32 %v554, %v653
        %v728 = vadd.f32 %v555, %v655
        %v729 = vadd.f32 %v556, %v724
        %v730 = vld [vmem:[%s210] sm:$0xff]
        %v731 = vld [vmem:[%s210 + $0x8] sm:$0xff]
        %s732 = scalar_lea.vmem %s214, 24
        %v733 = vld [vmem:[%s732] sm:$0xff]
        %v736 = vcombine.high %v730, %v730
        %v737 = vcombine.high %v731, %v731
        %738 = vrot.lane.b32.xlu0 %v730, 110
        %v739 = vpop.permute.xlu0 %738
        %740 = vrot.lane.b32.xlu0 %v736, 110
        %v741 = vpop.permute.xlu0 %740
        %742 = vrot.lane.b32.xlu0 %v731, 110
        %v743 = vpop.permute.xlu0 %742
        %744 = vrot.lane.b32.xlu0 %v737, 110
        %v745 = vpop.permute.xlu0 %744
        %vm746 = vcmask 900096
        %v747 = vsel %vm746, %v739, %v741
        %v748 = vsel %vm746, %v741, %v743
        %v749 = vsel %vm746, %v743, %v745
        %v751 = vsel %vm229, %v733, 0
        %v753 = vsel %vm233, %v747, 0
        %v755 = vsel %vm233, %v748, 0
        %v757 = vsel %vm233, %v749, 0
        %759 = vmatprep.subr.mxu0 0.0
        %760 = vmatpush1.msra.mxu0 0.0
        %761 = vmatprep.subr.mxu0 0.0
        %762 = vmatpush1.msra.mxu0 0.0
        %763 = vmatprep.subr.mxu0 0.0
        %764 = vmatpush1.msra.mxu0 0.0
        %765 = vmatprep.subr.mxu0 0.0
        %766 = vmatpush1.msra.mxu0 0.0
        %767 = vmatprep.subr.mxu0 0.0
        %768 = vmatpush1.msra.mxu0 0.0
        %769 = vmatprep.subr.mxu0 0.0
        %770 = vmatpush1.msra.mxu0 0.0
        %771 = vmatprep.subr.mxu0 0.0
        %772 = vmatpush1.msra.mxu0 0.0
        %773 = vmatprep.subr.mxu0 0.0
        %774 = vmatpush1.msra.mxu0 0.0
        %775 = vmatprep.subr.mxu0 0.0
        %776 = vmatpush1.msra.mxu0 0.0
        %777 = vmatprep.subr.mxu0 0.0
        %778 = vmatpush1.msra.mxu0 0.0
        %779 = vmatprep.subr.mxu0 0.0
        %780 = vmatpush1.msra.mxu0 0.0
        %781 = vmatprep.subr.mxu0 0.0
        %782 = vmatpush1.msra.mxu0 0.0
        %783 = vmatprep.subr.mxu0 0.0
        %784 = vmatpush1.msra.mxu0 0.0
        %785 = vmatprep.subr.mxu0 0.0
        %786 = vmatpush1.msra.mxu0 0.0
        %787 = vmatprep.subr.mxu0 0.0
        %788 = vmatpush1.msra.mxu0 0.0
        %789 = vmatprep.subr.mxu0 %v755
        %790 = vmatpush1.msra.mxu0 %v753
        %791 = vmatprep.subr.mxu0 0.0
        %792 = vmatpush2.msra.mxu0 0.0
        %793 = vmatprep.subr.mxu0 0.0
        %794 = vmatpush2.msra.mxu0 0.0
        %795 = vmatprep.subr.mxu0 0.0
        %796 = vmatpush2.msra.mxu0 0.0
        %797 = vmatprep.subr.mxu0 0.0
        %798 = vmatpush2.msra.mxu0 0.0
        %799 = vmatprep.subr.mxu0 0.0
        %800 = vmatpush2.msra.mxu0 0.0
        %801 = vmatprep.subr.mxu0 0.0
        %802 = vmatpush2.msra.mxu0 0.0
        %803 = vmatprep.subr.mxu0 0.0
        %804 = vmatpush2.msra.mxu0 0.0
        %805 = vmatprep.subr.mxu0 0.0
        %806 = vmatpush2.msra.mxu0 0.0
        %807 = vmatprep.subr.mxu0 0.0
        %808 = vmatpush2.msra.mxu0 0.0
        %809 = vmatprep.subr.mxu0 0.0
        %810 = vmatpush2.msra.mxu0 0.0
        %811 = vmatprep.subr.mxu0 0.0
        %812 = vmatpush2.msra.mxu0 0.0
        %813 = vmatprep.subr.mxu0 0.0
        %814 = vmatpush2.msra.mxu0 0.0
        %815 = vmatprep.subr.mxu0 0.0
        %816 = vmatpush2.msra.mxu0 0.0
        %817 = vmatprep.subr.mxu0 0.0
        %818 = vmatpush2.msra.mxu0 0.0
        %819 = vmatprep.subr.mxu0 0.0
        %820 = vmatpush2.msra.mxu0 0.0
        %821 = vmatprep.subr.mxu0 0.0
        %822 = vmatpush2.msra.mxu0 0.0
        %823 = vmatprep.mubr.f32.mxu0 0.0
        %824 = vmatmul.mubr.f32.gmra.mxu0 %v751
        %v825 = vpop.f32.mrf.mxu0
        %v826 = vadd.f32 0.0, %v825
        %v827 = vpop.f32.mrf.mxu0
        %v828 = vadd.f32 0.0, %v827
        %829 = vdwg.mxu0
        %830 = vmatprep.subr.mxu0 0.0
        %831 = vmatpush1.msra.mxu0 0.0
        %832 = vmatprep.subr.mxu0 0.0
        %833 = vmatpush1.msra.mxu0 0.0
        %834 = vmatprep.subr.mxu0 0.0
        %835 = vmatpush1.msra.mxu0 0.0
        %836 = vmatprep.subr.mxu0 0.0
        %837 = vmatpush1.msra.mxu0 0.0
        %838 = vmatprep.subr.mxu0 0.0
        %839 = vmatpush1.msra.mxu0 0.0
        %840 = vmatprep.subr.mxu0 0.0
        %841 = vmatpush1.msra.mxu0 0.0
        %842 = vmatprep.subr.mxu0 0.0
        %843 = vmatpush1.msra.mxu0 0.0
        %844 = vmatprep.subr.mxu0 0.0
        %845 = vmatpush1.msra.mxu0 0.0
        %846 = vmatprep.subr.mxu0 0.0
        %847 = vmatpush1.msra.mxu0 0.0
        %848 = vmatprep.subr.mxu0 0.0
        %849 = vmatpush1.msra.mxu0 0.0
        %850 = vmatprep.subr.mxu0 0.0
        %851 = vmatpush1.msra.mxu0 0.0
        %852 = vmatprep.subr.mxu0 0.0
        %853 = vmatpush1.msra.mxu0 0.0
        %854 = vmatprep.subr.mxu0 0.0
        %855 = vmatpush1.msra.mxu0 0.0
        %856 = vmatprep.subr.mxu0 0.0
        %857 = vmatpush1.msra.mxu0 0.0
        %858 = vmatprep.subr.mxu0 0.0
        %859 = vmatpush1.msra.mxu0 0.0
        %860 = vmatprep.subr.mxu0 0.0
        %861 = vmatpush1.msra.mxu0 %v757
        %862 = vmatprep.subr.mxu0 0.0
        %863 = vmatpush2.msra.mxu0 0.0
        %864 = vmatprep.subr.mxu0 0.0
        %865 = vmatpush2.msra.mxu0 0.0
        %866 = vmatprep.subr.mxu0 0.0
        %867 = vmatpush2.msra.mxu0 0.0
        %868 = vmatprep.subr.mxu0 0.0
        %869 = vmatpush2.msra.mxu0 0.0
        %870 = vmatprep.subr.mxu0 0.0
        %871 = vmatpush2.msra.mxu0 0.0
        %872 = vmatprep.subr.mxu0 0.0
        %873 = vmatpush2.msra.mxu0 0.0
        %874 = vmatprep.subr.mxu0 0.0
        %875 = vmatpush2.msra.mxu0 0.0
        %876 = vmatprep.subr.mxu0 0.0
        %877 = vmatpush2.msra.mxu0 0.0
        %878 = vmatprep.subr.mxu0 0.0
        %879 = vmatpush2.msra.mxu0 0.0
        %880 = vmatprep.subr.mxu0 0.0
        %881 = vmatpush2.msra.mxu0 0.0
        %882 = vmatprep.subr.mxu0 0.0
        %883 = vmatpush2.msra.mxu0 0.0
        %884 = vmatprep.subr.mxu0 0.0
        %885 = vmatpush2.msra.mxu0 0.0
        %886 = vmatprep.subr.mxu0 0.0
        %887 = vmatpush2.msra.mxu0 0.0
        %888 = vmatprep.subr.mxu0 0.0
        %889 = vmatpush2.msra.mxu0 0.0
        %890 = vmatprep.subr.mxu0 0.0
        %891 = vmatpush2.msra.mxu0 0.0
        %892 = vmatprep.subr.mxu0 0.0
        %893 = vmatpush2.msra.mxu0 0.0
        %894 = vmatprep.mubr.f32.mxu0 0.0
        %895 = vmatmul.mubr.f32.gmra.mxu0 %v751
        %v896 = vpop.f32.mrf.mxu0
        %v897 = vadd.f32 0.0, %v896
        %v898 = vpop.f32.mrf.mxu0
        %899 = vdwg.mxu0
        %v900 = vadd.f32 %v727, %v826
        %v901 = vadd.f32 %v728, %v828
        %v902 = vadd.f32 %v729, %v897
        %v903 = vld [vmem:[%s210] sm:$0xff]
        %v904 = vld [vmem:[%s210 + $0x8] sm:$0xff]
        %s905 = scalar_lea.vmem %s214, 32
        %v906 = vld [vmem:[%s905] sm:$0xff]
        %v909 = vcombine.high %v903, %v903
        %v910 = vcombine.high %v904, %v904
        %911 = vrot.lane.b32.xlu0 %v903, 109
        %v912 = vpop.permute.xlu0 %911
        %913 = vrot.lane.b32.xlu0 %v909, 109
        %v914 = vpop.permute.xlu0 %913
        %915 = vrot.lane.b32.xlu0 %v904, 109
        %v916 = vpop.permute.xlu0 %915
        %917 = vrot.lane.b32.xlu0 %v910, 109
        %v918 = vpop.permute.xlu0 %917
        %vm919 = vcmask 891904
        %v920 = vsel %vm919, %v912, %v914
        %v921 = vsel %vm919, %v914, %v916
        %v922 = vsel %vm919, %v916, %v918
        %v924 = vsel %vm229, %v906, 0
        %v926 = vsel %vm233, %v920, 0
        %v928 = vsel %vm233, %v921, 0
        %v930 = vsel %vm233, %v922, 0
        %932 = vmatprep.subr.mxu0 0.0
        %933 = vmatpush1.msra.mxu0 0.0
        %934 = vmatprep.subr.mxu0 0.0
        %935 = vmatpush1.msra.mxu0 0.0
        %936 = vmatprep.subr.mxu0 0.0
        %937 = vmatpush1.msra.mxu0 0.0
        %938 = vmatprep.subr.mxu0 0.0
        %939 = vmatpush1.msra.mxu0 0.0
        %940 = vmatprep.subr.mxu0 0.0
        %941 = vmatpush1.msra.mxu0 0.0
        %942 = vmatprep.subr.mxu0 0.0
        %943 = vmatpush1.msra.mxu0 0.0
        %944 = vmatprep.subr.mxu0 0.0
        %945 = vmatpush1.msra.mxu0 0.0
        %946 = vmatprep.subr.mxu0 0.0
        %947 = vmatpush1.msra.mxu0 0.0
        %948 = vmatprep.subr.mxu0 0.0
        %949 = vmatpush1.msra.mxu0 0.0
        %950 = vmatprep.subr.mxu0 0.0
        %951 = vmatpush1.msra.mxu0 0.0
        %952 = vmatprep.subr.mxu0 0.0
        %953 = vmatpush1.msra.mxu0 0.0
        %954 = vmatprep.subr.mxu0 0.0
        %955 = vmatpush1.msra.mxu0 0.0
        %956 = vmatprep.subr.mxu0 0.0
        %957 = vmatpush1.msra.mxu0 0.0
        %958 = vmatprep.subr.mxu0 0.0
        %959 = vmatpush1.msra.mxu0 0.0
        %960 = vmatprep.subr.mxu0 0.0
        %961 = vmatpush1.msra.mxu0 0.0
        %962 = vmatprep.subr.mxu0 %v928
        %963 = vmatpush1.msra.mxu0 %v926
        %964 = vmatprep.subr.mxu0 0.0
        %965 = vmatpush2.msra.mxu0 0.0
        %966 = vmatprep.subr.mxu0 0.0
        %967 = vmatpush2.msra.mxu0 0.0
        %968 = vmatprep.subr.mxu0 0.0
        %969 = vmatpush2.msra.mxu0 0.0
        %970 = vmatprep.subr.mxu0 0.0
        %971 = vmatpush2.msra.mxu0 0.0
        %972 = vmatprep.subr.mxu0 0.0
        %973 = vmatpush2.msra.mxu0 0.0
        %974 = vmatprep.subr.mxu0 0.0
        %975 = vmatpush2.msra.mxu0 0.0
        %976 = vmatprep.subr.mxu0 0.0
        %977 = vmatpush2.msra.mxu0 0.0
        %978 = vmatprep.subr.mxu0 0.0
        %979 = vmatpush2.msra.mxu0 0.0
        %980 = vmatprep.subr.mxu0 0.0
        %981 = vmatpush2.msra.mxu0 0.0
        %982 = vmatprep.subr.mxu0 0.0
        %983 = vmatpush2.msra.mxu0 0.0
        %984 = vmatprep.subr.mxu0 0.0
        %985 = vmatpush2.msra.mxu0 0.0
        %986 = vmatprep.subr.mxu0 0.0
        %987 = vmatpush2.msra.mxu0 0.0
        %988 = vmatprep.subr.mxu0 0.0
        %989 = vmatpush2.msra.mxu0 0.0
        %990 = vmatprep.subr.mxu0 0.0
        %991 = vmatpush2.msra.mxu0 0.0
        %992 = vmatprep.subr.mxu0 0.0
        %993 = vmatpush2.msra.mxu0 0.0
        %994 = vmatprep.subr.mxu0 0.0
        %995 = vmatpush2.msra.mxu0 0.0
        %996 = vmatprep.mubr.f32.mxu0 0.0
        %997 = vmatmul.mubr.f32.gmra.mxu0 %v924
        %v998 = vpop.f32.mrf.mxu0
        %v999 = vadd.f32 0.0, %v998
        %v1000 = vpop.f32.mrf.mxu0
        %v1001 = vadd.f32 0.0, %v1000
        %1002 = vdwg.mxu0
        %1003 = vmatprep.subr.mxu0 0.0
        %1004 = vmatpush1.msra.mxu0 0.0
        %1005 = vmatprep.subr.mxu0 0.0
        %1006 = vmatpush1.msra.mxu0 0.0
        %1007 = vmatprep.subr.mxu0 0.0
        %1008 = vmatpush1.msra.mxu0 0.0
        %1009 = vmatprep.subr.mxu0 0.0
        %1010 = vmatpush1.msra.mxu0 0.0
        %1011 = vmatprep.subr.mxu0 0.0
        %1012 = vmatpush1.msra.mxu0 0.0
        %1013 = vmatprep.subr.mxu0 0.0
        %1014 = vmatpush1.msra.mxu0 0.0
        %1015 = vmatprep.subr.mxu0 0.0
        %1016 = vmatpush1.msra.mxu0 0.0
        %1017 = vmatprep.subr.mxu0 0.0
        %1018 = vmatpush1.msra.mxu0 0.0
        %1019 = vmatprep.subr.mxu0 0.0
        %1020 = vmatpush1.msra.mxu0 0.0
        %1021 = vmatprep.subr.mxu0 0.0
        %1022 = vmatpush1.msra.mxu0 0.0
        %1023 = vmatprep.subr.mxu0 0.0
        %1024 = vmatpush1.msra.mxu0 0.0
        %1025 = vmatprep.subr.mxu0 0.0
        %1026 = vmatpush1.msra.mxu0 0.0
        %1027 = vmatprep.subr.mxu0 0.0
        %1028 = vmatpush1.msra.mxu0 0.0
        %1029 = vmatprep.subr.mxu0 0.0
        %1030 = vmatpush1.msra.mxu0 0.0
        %1031 = vmatprep.subr.mxu0 0.0
        %1032 = vmatpush1.msra.mxu0 0.0
        %1033 = vmatprep.subr.mxu0 0.0
        %1034 = vmatpush1.msra.mxu0 %v930
        %1035 = vmatprep.subr.mxu0 0.0
        %1036 = vmatpush2.msra.mxu0 0.0
        %1037 = vmatprep.subr.mxu0 0.0
        %1038 = vmatpush2.msra.mxu0 0.0
        %1039 = vmatprep.subr.mxu0 0.0
        %1040 = vmatpush2.msra.mxu0 0.0
        %1041 = vmatprep.subr.mxu0 0.0
        %1042 = vmatpush2.msra.mxu0 0.0
        %1043 = vmatprep.subr.mxu0 0.0
        %1044 = vmatpush2.msra.mxu0 0.0
        %1045 = vmatprep.subr.mxu0 0.0
        %1046 = vmatpush2.msra.mxu0 0.0
        %1047 = vmatprep.subr.mxu0 0.0
        %1048 = vmatpush2.msra.mxu0 0.0
        %1049 = vmatprep.subr.mxu0 0.0
        %1050 = vmatpush2.msra.mxu0 0.0
        %1051 = vmatprep.subr.mxu0 0.0
        %1052 = vmatpush2.msra.mxu0 0.0
        %1053 = vmatprep.subr.mxu0 0.0
        %1054 = vmatpush2.msra.mxu0 0.0
        %1055 = vmatprep.subr.mxu0 0.0
        %1056 = vmatpush2.msra.mxu0 0.0
        %1057 = vmatprep.subr.mxu0 0.0
        %1058 = vmatpush2.msra.mxu0 0.0
        %1059 = vmatprep.subr.mxu0 0.0
        %1060 = vmatpush2.msra.mxu0 0.0
        %1061 = vmatprep.subr.mxu0 0.0
        %1062 = vmatpush2.msra.mxu0 0.0
        %1063 = vmatprep.subr.mxu0 0.0
        %1064 = vmatpush2.msra.mxu0 0.0
        %1065 = vmatprep.subr.mxu0 0.0
        %1066 = vmatpush2.msra.mxu0 0.0
        %1067 = vmatprep.mubr.f32.mxu0 0.0
        %1068 = vmatmul.mubr.f32.gmra.mxu0 %v924
        %v1069 = vpop.f32.mrf.mxu0
        %v1070 = vadd.f32 0.0, %v1069
        %v1071 = vpop.f32.mrf.mxu0
        %1072 = vdwg.mxu0
        %v1073 = vadd.f32 %v900, %v999
        %v1074 = vadd.f32 %v901, %v1001
        %v1075 = vadd.f32 %v902, %v1070
        %v1076 = vld [vmem:[%s210] sm:$0xff]
        %v1077 = vld [vmem:[%s210 + $0x8] sm:$0xff]
        %s1078 = scalar_lea.vmem %s214, 40
        %v1079 = vld [vmem:[%s1078] sm:$0xff]
        %v1082 = vcombine.high %v1076, %v1076
        %v1083 = vcombine.high %v1077, %v1077
        %1084 = vrot.lane.b32.xlu0 %v1076, 108
        %v1085 = vpop.permute.xlu0 %1084
        %1086 = vrot.lane.b32.xlu0 %v1082, 108
        %v1087 = vpop.permute.xlu0 %1086
        %1088 = vrot.lane.b32.xlu0 %v1077, 108
        %v1089 = vpop.permute.xlu0 %1088
        %1090 = vrot.lane.b32.xlu0 %v1083, 108
        %v1091 = vpop.permute.xlu0 %1090
        %vm1092 = vcmask 883712
        %v1093 = vsel %vm1092, %v1085, %v1087
        %v1094 = vsel %vm1092, %v1087, %v1089
        %v1095 = vsel %vm1092, %v1089, %v1091
        %v1097 = vsel %vm229, %v1079, 0
        %v1099 = vsel %vm233, %v1093, 0
        %v1101 = vsel %vm233, %v1094, 0
        %v1103 = vsel %vm233, %v1095, 0
        %1105 = vmatprep.subr.mxu0 0.0
        %1106 = vmatpush1.msra.mxu0 0.0
        %1107 = vmatprep.subr.mxu0 0.0
        %1108 = vmatpush1.msra.mxu0 0.0
        %1109 = vmatprep.subr.mxu0 0.0
        %1110 = vmatpush1.msra.mxu0 0.0
        %1111 = vmatprep.subr.mxu0 0.0
        %1112 = vmatpush1.msra.mxu0 0.0
        %1113 = vmatprep.subr.mxu0 0.0
        %1114 = vmatpush1.msra.mxu0 0.0
        %1115 = vmatprep.subr.mxu0 0.0
        %1116 = vmatpush1.msra.mxu0 0.0
        %1117 = vmatprep.subr.mxu0 0.0
        %1118 = vmatpush1.msra.mxu0 0.0
        %1119 = vmatprep.subr.mxu0 0.0
        %1120 = vmatpush1.msra.mxu0 0.0
        %1121 = vmatprep.subr.mxu0 0.0
        %1122 = vmatpush1.msra.mxu0 0.0
        %1123 = vmatprep.subr.mxu0 0.0
        %1124 = vmatpush1.msra.mxu0 0.0
        %1125 = vmatprep.subr.mxu0 0.0
        %1126 = vmatpush1.msra.mxu0 0.0
        %1127 = vmatprep.subr.mxu0 0.0
        %1128 = vmatpush1.msra.mxu0 0.0
        %1129 = vmatprep.subr.mxu0 0.0
        %1130 = vmatpush1.msra.mxu0 0.0
        %1131 = vmatprep.subr.mxu0 0.0
        %1132 = vmatpush1.msra.mxu0 0.0
        %1133 = vmatprep.subr.mxu0 0.0
        %1134 = vmatpush1.msra.mxu0 0.0
        %1135 = vmatprep.subr.mxu0 %v1101
        %1136 = vmatpush1.msra.mxu0 %v1099
        %1137 = vmatprep.subr.mxu0 0.0
        %1138 = vmatpush2.msra.mxu0 0.0
        %1139 = vmatprep.subr.mxu0 0.0
        %1140 = vmatpush2.msra.mxu0 0.0
        %1141 = vmatprep.subr.mxu0 0.0
        %1142 = vmatpush2.msra.mxu0 0.0
        %1143 = vmatprep.subr.mxu0 0.0
        %1144 = vmatpush2.msra.mxu0 0.0
        %1145 = vmatprep.subr.mxu0 0.0
        %1146 = vmatpush2.msra.mxu0 0.0
        %1147 = vmatprep.subr.mxu0 0.0
        %1148 = vmatpush2.msra.mxu0 0.0
        %1149 = vmatprep.subr.mxu0 0.0
        %1150 = vmatpush2.msra.mxu0 0.0
        %1151 = vmatprep.subr.mxu0 0.0
        %1152 = vmatpush2.msra.mxu0 0.0
        %1153 = vmatprep.subr.mxu0 0.0
        %1154 = vmatpush2.msra.mxu0 0.0
        %1155 = vmatprep.subr.mxu0 0.0
        %1156 = vmatpush2.msra.mxu0 0.0
        %1157 = vmatprep.subr.mxu0 0.0
        %1158 = vmatpush2.msra.mxu0 0.0
        %1159 = vmatprep.subr.mxu0 0.0
        %1160 = vmatpush2.msra.mxu0 0.0
        %1161 = vmatprep.subr.mxu0 0.0
        %1162 = vmatpush2.msra.mxu0 0.0
        %1163 = vmatprep.subr.mxu0 0.0
        %1164 = vmatpush2.msra.mxu0 0.0
        %1165 = vmatprep.subr.mxu0 0.0
        %1166 = vmatpush2.msra.mxu0 0.0
        %1167 = vmatprep.subr.mxu0 0.0
        %1168 = vmatpush2.msra.mxu0 0.0
        %1169 = vmatprep.mubr.f32.mxu0 0.0
        %1170 = vmatmul.mubr.f32.gmra.mxu0 %v1097
        %v1171 = vpop.f32.mrf.mxu0
        %v1172 = vadd.f32 0.0, %v1171
        %v1173 = vpop.f32.mrf.mxu0
        %v1174 = vadd.f32 0.0, %v1173
        %1175 = vdwg.mxu0
        %1176 = vmatprep.subr.mxu0 0.0
        %1177 = vmatpush1.msra.mxu0 0.0
        %1178 = vmatprep.subr.mxu0 0.0
        %1179 = vmatpush1.msra.mxu0 0.0
        %1180 = vmatprep.subr.mxu0 0.0
        %1181 = vmatpush1.msra.mxu0 0.0
        %1182 = vmatprep.subr.mxu0 0.0
        %1183 = vmatpush1.msra.mxu0 0.0
        %1184 = vmatprep.subr.mxu0 0.0
        %1185 = vmatpush1.msra.mxu0 0.0
        %1186 = vmatprep.subr.mxu0 0.0
        %1187 = vmatpush1.msra.mxu0 0.0
        %1188 = vmatprep.subr.mxu0 0.0
        %1189 = vmatpush1.msra.mxu0 0.0
        %1190 = vmatprep.subr.mxu0 0.0
        %1191 = vmatpush1.msra.mxu0 0.0
        %1192 = vmatprep.subr.mxu0 0.0
        %1193 = vmatpush1.msra.mxu0 0.0
        %1194 = vmatprep.subr.mxu0 0.0
        %1195 = vmatpush1.msra.mxu0 0.0
        %1196 = vmatprep.subr.mxu0 0.0
        %1197 = vmatpush1.msra.mxu0 0.0
        %1198 = vmatprep.subr.mxu0 0.0
        %1199 = vmatpush1.msra.mxu0 0.0
        %1200 = vmatprep.subr.mxu0 0.0
        %1201 = vmatpush1.msra.mxu0 0.0
        %1202 = vmatprep.subr.mxu0 0.0
        %1203 = vmatpush1.msra.mxu0 0.0
        %1204 = vmatprep.subr.mxu0 0.0
        %1205 = vmatpush1.msra.mxu0 0.0
        %1206 = vmatprep.subr.mxu0 0.0
        %1207 = vmatpush1.msra.mxu0 %v1103
        %1208 = vmatprep.subr.mxu0 0.0
        %1209 = vmatpush2.msra.mxu0 0.0
        %1210 = vmatprep.subr.mxu0 0.0
        %1211 = vmatpush2.msra.mxu0 0.0
        %1212 = vmatprep.subr.mxu0 0.0
        %1213 = vmatpush2.msra.mxu0 0.0
        %1214 = vmatprep.subr.mxu0 0.0
        %1215 = vmatpush2.msra.mxu0 0.0
        %1216 = vmatprep.subr.mxu0 0.0
        %1217 = vmatpush2.msra.mxu0 0.0
        %1218 = vmatprep.subr.mxu0 0.0
        %1219 = vmatpush2.msra.mxu0 0.0
        %1220 = vmatprep.subr.mxu0 0.0
        %1221 = vmatpush2.msra.mxu0 0.0
        %1222 = vmatprep.subr.mxu0 0.0
        %1223 = vmatpush2.msra.mxu0 0.0
        %1224 = vmatprep.subr.mxu0 0.0
        %1225 = vmatpush2.msra.mxu0 0.0
        %1226 = vmatprep.subr.mxu0 0.0
        %1227 = vmatpush2.msra.mxu0 0.0
        %1228 = vmatprep.subr.mxu0 0.0
        %1229 = vmatpush2.msra.mxu0 0.0
        %1230 = vmatprep.subr.mxu0 0.0
        %1231 = vmatpush2.msra.mxu0 0.0
        %1232 = vmatprep.subr.mxu0 0.0
        %1233 = vmatpush2.msra.mxu0 0.0
        %1234 = vmatprep.subr.mxu0 0.0
        %1235 = vmatpush2.msra.mxu0 0.0
        %1236 = vmatprep.subr.mxu0 0.0
        %1237 = vmatpush2.msra.mxu0 0.0
        %1238 = vmatprep.subr.mxu0 0.0
        %1239 = vmatpush2.msra.mxu0 0.0
        %1240 = vmatprep.mubr.f32.mxu0 0.0
        %1241 = vmatmul.mubr.f32.gmra.mxu0 %v1097
        %v1242 = vpop.f32.mrf.mxu0
        %v1243 = vadd.f32 0.0, %v1242
        %v1244 = vpop.f32.mrf.mxu0
        %1245 = vdwg.mxu0
        %v1246 = vadd.f32 %v1073, %v1172
        %v1247 = vadd.f32 %v1074, %v1174
        %v1248 = vadd.f32 %v1075, %v1243
        %v1249 = vld [vmem:[%s210] sm:$0xff]
        %v1250 = vld [vmem:[%s210 + $0x8] sm:$0xff]
        %s1251 = scalar_lea.vmem %s214, 48
        %v1252 = vld [vmem:[%s1251] sm:$0xff]
        %v1255 = vcombine.high %v1249, %v1249
        %v1256 = vcombine.high %v1250, %v1250
        %1257 = vrot.lane.b32.xlu0 %v1249, 92
        %v1258 = vpop.permute.xlu0 %1257
        %1259 = vrot.lane.b32.xlu0 %v1255, 92
        %v1260 = vpop.permute.xlu0 %1259
        %1261 = vrot.lane.b32.xlu0 %v1250, 92
        %v1262 = vpop.permute.xlu0 %1261
        %1263 = vrot.lane.b32.xlu0 %v1256, 92
        %v1264 = vpop.permute.xlu0 %1263
        %vm1265 = vcmask 752640
        %v1266 = vsel %vm1265, %v1258, %v1260
        %v1267 = vsel %vm1265, %v1260, %v1262
        %v1268 = vsel %vm1265, %v1262, %v1264
        %v1270 = vsel %vm229, %v1252, 0
        %v1272 = vsel %vm233, %v1266, 0
        %v1274 = vsel %vm233, %v1267, 0
        %v1276 = vsel %vm233, %v1268, 0
        %1278 = vmatprep.subr.mxu0 0.0
        %1279 = vmatpush1.msra.mxu0 0.0
        %1280 = vmatprep.subr.mxu0 0.0
        %1281 = vmatpush1.msra.mxu0 0.0
        %1282 = vmatprep.subr.mxu0 0.0
        %1283 = vmatpush1.msra.mxu0 0.0
        %1284 = vmatprep.subr.mxu0 0.0
        %1285 = vmatpush1.msra.mxu0 0.0
        %1286 = vmatprep.subr.mxu0 0.0
        %1287 = vmatpush1.msra.mxu0 0.0
        %1288 = vmatprep.subr.mxu0 0.0
        %1289 = vmatpush1.msra.mxu0 0.0
        %1290 = vmatprep.subr.mxu0 0.0
        %1291 = vmatpush1.msra.mxu0 0.0
        %1292 = vmatprep.subr.mxu0 0.0
        %1293 = vmatpush1.msra.mxu0 0.0
        %1294 = vmatprep.subr.mxu0 0.0
        %1295 = vmatpush1.msra.mxu0 0.0
        %1296 = vmatprep.subr.mxu0 0.0
        %1297 = vmatpush1.msra.mxu0 0.0
        %1298 = vmatprep.subr.mxu0 0.0
        %1299 = vmatpush1.msra.mxu0 0.0
        %1300 = vmatprep.subr.mxu0 0.0
        %1301 = vmatpush1.msra.mxu0 0.0
        %1302 = vmatprep.subr.mxu0 0.0
        %1303 = vmatpush1.msra.mxu0 0.0
        %1304 = vmatprep.subr.mxu0 0.0
        %1305 = vmatpush1.msra.mxu0 0.0
        %1306 = vmatprep.subr.mxu0 0.0
        %1307 = vmatpush1.msra.mxu0 0.0
        %1308 = vmatprep.subr.mxu0 %v1274
        %1309 = vmatpush1.msra.mxu0 %v1272
        %1310 = vmatprep.subr.mxu0 0.0
        %1311 = vmatpush2.msra.mxu0 0.0
        %1312 = vmatprep.subr.mxu0 0.0
        %1313 = vmatpush2.msra.mxu0 0.0
        %1314 = vmatprep.subr.mxu0 0.0
        %1315 = vmatpush2.msra.mxu0 0.0
        %1316 = vmatprep.subr.mxu0 0.0
        %1317 = vmatpush2.msra.mxu0 0.0
        %1318 = vmatprep.subr.mxu0 0.0
        %1319 = vmatpush2.msra.mxu0 0.0
        %1320 = vmatprep.subr.mxu0 0.0
        %1321 = vmatpush2.msra.mxu0 0.0
        %1322 = vmatprep.subr.mxu0 0.0
        %1323 = vmatpush2.msra.mxu0 0.0
        %1324 = vmatprep.subr.mxu0 0.0
        %1325 = vmatpush2.msra.mxu0 0.0
        %1326 = vmatprep.subr.mxu0 0.0
        %1327 = vmatpush2.msra.mxu0 0.0
        %1328 = vmatprep.subr.mxu0 0.0
        %1329 = vmatpush2.msra.mxu0 0.0
        %1330 = vmatprep.subr.mxu0 0.0
        %1331 = vmatpush2.msra.mxu0 0.0
        %1332 = vmatprep.subr.mxu0 0.0
        %1333 = vmatpush2.msra.mxu0 0.0
        %1334 = vmatprep.subr.mxu0 0.0
        %1335 = vmatpush2.msra.mxu0 0.0
        %1336 = vmatprep.subr.mxu0 0.0
        %1337 = vmatpush2.msra.mxu0 0.0
        %1338 = vmatprep.subr.mxu0 0.0
        %1339 = vmatpush2.msra.mxu0 0.0
        %1340 = vmatprep.subr.mxu0 0.0
        %1341 = vmatpush2.msra.mxu0 0.0
        %1342 = vmatprep.mubr.f32.mxu0 0.0
        %1343 = vmatmul.mubr.f32.gmra.mxu0 %v1270
        %v1344 = vpop.f32.mrf.mxu0
        %v1345 = vadd.f32 0.0, %v1344
        %v1346 = vpop.f32.mrf.mxu0
        %v1347 = vadd.f32 0.0, %v1346
        %1348 = vdwg.mxu0
        %1349 = vmatprep.subr.mxu0 0.0
        %1350 = vmatpush1.msra.mxu0 0.0
        %1351 = vmatprep.subr.mxu0 0.0
        %1352 = vmatpush1.msra.mxu0 0.0
        %1353 = vmatprep.subr.mxu0 0.0
        %1354 = vmatpush1.msra.mxu0 0.0
        %1355 = vmatprep.subr.mxu0 0.0
        %1356 = vmatpush1.msra.mxu0 0.0
        %1357 = vmatprep.subr.mxu0 0.0
        %1358 = vmatpush1.msra.mxu0 0.0
        %1359 = vmatprep.subr.mxu0 0.0
        %1360 = vmatpush1.msra.mxu0 0.0
        %1361 = vmatprep.subr.mxu0 0.0
        %1362 = vmatpush1.msra.mxu0 0.0
        %1363 = vmatprep.subr.mxu0 0.0
        %1364 = vmatpush1.msra.mxu0 0.0
        %1365 = vmatprep.subr.mxu0 0.0
        %1366 = vmatpush1.msra.mxu0 0.0
        %1367 = vmatprep.subr.mxu0 0.0
        %1368 = vmatpush1.msra.mxu0 0.0
        %1369 = vmatprep.subr.mxu0 0.0
        %1370 = vmatpush1.msra.mxu0 0.0
        %1371 = vmatprep.subr.mxu0 0.0
        %1372 = vmatpush1.msra.mxu0 0.0
        %1373 = vmatprep.subr.mxu0 0.0
        %1374 = vmatpush1.msra.mxu0 0.0
        %1375 = vmatprep.subr.mxu0 0.0
        %1376 = vmatpush1.msra.mxu0 0.0
        %1377 = vmatprep.subr.mxu0 0.0
        %1378 = vmatpush1.msra.mxu0 0.0
        %1379 = vmatprep.subr.mxu0 0.0
        %1380 = vmatpush1.msra.mxu0 %v1276
        %1381 = vmatprep.subr.mxu0 0.0
        %1382 = vmatpush2.msra.mxu0 0.0
        %1383 = vmatprep.subr.mxu0 0.0
        %1384 = vmatpush2.msra.mxu0 0.0
        %1385 = vmatprep.subr.mxu0 0.0
        %1386 = vmatpush2.msra.mxu0 0.0
        %1387 = vmatprep.subr.mxu0 0.0
        %1388 = vmatpush2.msra.mxu0 0.0
        %1389 = vmatprep.subr.mxu0 0.0
        %1390 = vmatpush2.msra.mxu0 0.0
        %1391 = vmatprep.subr.mxu0 0.0
        %1392 = vmatpush2.msra.mxu0 0.0
        %1393 = vmatprep.subr.mxu0 0.0
        %1394 = vmatpush2.msra.mxu0 0.0
        %1395 = vmatprep.subr.mxu0 0.0
        %1396 = vmatpush2.msra.mxu0 0.0
        %1397 = vmatprep.subr.mxu0 0.0
        %1398 = vmatpush2.msra.mxu0 0.0
        %1399 = vmatprep.subr.mxu0 0.0
        %1400 = vmatpush2.msra.mxu0 0.0
        %1401 = vmatprep.subr.mxu0 0.0
        %1402 = vmatpush2.msra.mxu0 0.0
        %1403 = vmatprep.subr.mxu0 0.0
        %1404 = vmatpush2.msra.mxu0 0.0
        %1405 = vmatprep.subr.mxu0 0.0
        %1406 = vmatpush2.msra.mxu0 0.0
        %1407 = vmatprep.subr.mxu0 0.0
        %1408 = vmatpush2.msra.mxu0 0.0
        %1409 = vmatprep.subr.mxu0 0.0
        %1410 = vmatpush2.msra.mxu0 0.0
        %1411 = vmatprep.subr.mxu0 0.0
        %1412 = vmatpush2.msra.mxu0 0.0
        %1413 = vmatprep.mubr.f32.mxu0 0.0
        %1414 = vmatmul.mubr.f32.gmra.mxu0 %v1270
        %v1415 = vpop.f32.mrf.mxu0
        %v1416 = vadd.f32 0.0, %v1415
        %v1417 = vpop.f32.mrf.mxu0
        %1418 = vdwg.mxu0
        %v1419 = vadd.f32 %v1246, %v1345
        %v1420 = vadd.f32 %v1247, %v1347
        %v1421 = vadd.f32 %v1248, %v1416
        %v1422 = vld [vmem:[%s210] sm:$0xff]
        %v1423 = vld [vmem:[%s210 + $0x8] sm:$0xff]
        %s1424 = scalar_lea.vmem %s214, 56
        %v1425 = vld [vmem:[%s1424] sm:$0xff]
        %v1428 = vcombine.high %v1422, %v1422
        %v1429 = vcombine.high %v1423, %v1423
        %1430 = vrot.lane.b32.xlu0 %v1422, 91
        %v1431 = vpop.permute.xlu0 %1430
        %1432 = vrot.lane.b32.xlu0 %v1428, 91
        %v1433 = vpop.permute.xlu0 %1432
        %1434 = vrot.lane.b32.xlu0 %v1423, 91
        %v1435 = vpop.permute.xlu0 %1434
        %1436 = vrot.lane.b32.xlu0 %v1429, 91
        %v1437 = vpop.permute.xlu0 %1436
        %vm1438 = vcmask 744448
        %v1439 = vsel %vm1438, %v1431, %v1433
        %v1440 = vsel %vm1438, %v1433, %v1435
        %v1441 = vsel %vm1438, %v1435, %v1437
        %v1443 = vsel %vm229, %v1425, 0
        %v1445 = vsel %vm233, %v1439, 0
        %v1447 = vsel %vm233, %v1440, 0
        %v1449 = vsel %vm233, %v1441, 0
        %1451 = vmatprep.subr.mxu0 0.0
        %1452 = vmatpush1.msra.mxu0 0.0
        %1453 = vmatprep.subr.mxu0 0.0
        %1454 = vmatpush1.msra.mxu0 0.0
        %1455 = vmatprep.subr.mxu0 0.0
        %1456 = vmatpush1.msra.mxu0 0.0
        %1457 = vmatprep.subr.mxu0 0.0
        %1458 = vmatpush1.msra.mxu0 0.0
        %1459 = vmatprep.subr.mxu0 0.0
        %1460 = vmatpush1.msra.mxu0 0.0
        %1461 = vmatprep.subr.mxu0 0.0
        %1462 = vmatpush1.msra.mxu0 0.0
        %1463 = vmatprep.subr.mxu0 0.0
        %1464 = vmatpush1.msra.mxu0 0.0
        %1465 = vmatprep.subr.mxu0 0.0
        %1466 = vmatpush1.msra.mxu0 0.0
        %1467 = vmatprep.subr.mxu0 0.0
        %1468 = vmatpush1.msra.mxu0 0.0
        %1469 = vmatprep.subr.mxu0 0.0
        %1470 = vmatpush1.msra.mxu0 0.0
        %1471 = vmatprep.subr.mxu0 0.0
        %1472 = vmatpush1.msra.mxu0 0.0
        %1473 = vmatprep.subr.mxu0 0.0
        %1474 = vmatpush1.msra.mxu0 0.0
        %1475 = vmatprep.subr.mxu0 0.0
        %1476 = vmatpush1.msra.mxu0 0.0
        %1477 = vmatprep.subr.mxu0 0.0
        %1478 = vmatpush1.msra.mxu0 0.0
        %1479 = vmatprep.subr.mxu0 0.0
        %1480 = vmatpush1.msra.mxu0 0.0
        %1481 = vmatprep.subr.mxu0 %v1447
        %1482 = vmatpush1.msra.mxu0 %v1445
        %1483 = vmatprep.subr.mxu0 0.0
        %1484 = vmatpush2.msra.mxu0 0.0
        %1485 = vmatprep.subr.mxu0 0.0
        %1486 = vmatpush2.msra.mxu0 0.0
        %1487 = vmatprep.subr.mxu0 0.0
        %1488 = vmatpush2.msra.mxu0 0.0
        %1489 = vmatprep.subr.mxu0 0.0
        %1490 = vmatpush2.msra.mxu0 0.0
        %1491 = vmatprep.subr.mxu0 0.0
        %1492 = vmatpush2.msra.mxu0 0.0
        %1493 = vmatprep.subr.mxu0 0.0
        %1494 = vmatpush2.msra.mxu0 0.0
        %1495 = vmatprep.subr.mxu0 0.0
        %1496 = vmatpush2.msra.mxu0 0.0
        %1497 = vmatprep.subr.mxu0 0.0
        %1498 = vmatpush2.msra.mxu0 0.0
        %1499 = vmatprep.subr.mxu0 0.0
        %1500 = vmatpush2.msra.mxu0 0.0
        %1501 = vmatprep.subr.mxu0 0.0
        %1502 = vmatpush2.msra.mxu0 0.0
        %1503 = vmatprep.subr.mxu0 0.0
        %1504 = vmatpush2.msra.mxu0 0.0
        %1505 = vmatprep.subr.mxu0 0.0
        %1506 = vmatpush2.msra.mxu0 0.0
        %1507 = vmatprep.subr.mxu0 0.0
        %1508 = vmatpush2.msra.mxu0 0.0
        %1509 = vmatprep.subr.mxu0 0.0
        %1510 = vmatpush2.msra.mxu0 0.0
        %1511 = vmatprep.subr.mxu0 0.0
        %1512 = vmatpush2.msra.mxu0 0.0
        %1513 = vmatprep.subr.mxu0 0.0
        %1514 = vmatpush2.msra.mxu0 0.0
        %1515 = vmatprep.mubr.f32.mxu0 0.0
        %1516 = vmatmul.mubr.f32.gmra.mxu0 %v1443
        %v1517 = vpop.f32.mrf.mxu0
        %v1518 = vadd.f32 0.0, %v1517
        %v1519 = vpop.f32.mrf.mxu0
        %v1520 = vadd.f32 0.0, %v1519
        %1521 = vdwg.mxu0
        %1522 = vmatprep.subr.mxu0 0.0
        %1523 = vmatpush1.msra.mxu0 0.0
        %1524 = vmatprep.subr.mxu0 0.0
        %1525 = vmatpush1.msra.mxu0 0.0
        %1526 = vmatprep.subr.mxu0 0.0
        %1527 = vmatpush1.msra.mxu0 0.0
        %1528 = vmatprep.subr.mxu0 0.0
        %1529 = vmatpush1.msra.mxu0 0.0
        %1530 = vmatprep.subr.mxu0 0.0
        %1531 = vmatpush1.msra.mxu0 0.0
        %1532 = vmatprep.subr.mxu0 0.0
        %1533 = vmatpush1.msra.mxu0 0.0
        %1534 = vmatprep.subr.mxu0 0.0
        %1535 = vmatpush1.msra.mxu0 0.0
        %1536 = vmatprep.subr.mxu0 0.0
        %1537 = vmatpush1.msra.mxu0 0.0
        %1538 = vmatprep.subr.mxu0 0.0
        %1539 = vmatpush1.msra.mxu0 0.0
        %1540 = vmatprep.subr.mxu0 0.0
        %1541 = vmatpush1.msra.mxu0 0.0
        %1542 = vmatprep.subr.mxu0 0.0
        %1543 = vmatpush1.msra.mxu0 0.0
        %1544 = vmatprep.subr.mxu0 0.0
        %1545 = vmatpush1.msra.mxu0 0.0
        %1546 = vmatprep.subr.mxu0 0.0
        %1547 = vmatpush1.msra.mxu0 0.0
        %1548 = vmatprep.subr.mxu0 0.0
        %1549 = vmatpush1.msra.mxu0 0.0
        %1550 = vmatprep.subr.mxu0 0.0
        %1551 = vmatpush1.msra.mxu0 0.0
        %1552 = vmatprep.subr.mxu0 0.0
        %1553 = vmatpush1.msra.mxu0 %v1449
        %1554 = vmatprep.subr.mxu0 0.0
        %1555 = vmatpush2.msra.mxu0 0.0
        %1556 = vmatprep.subr.mxu0 0.0
        %1557 = vmatpush2.msra.mxu0 0.0
        %1558 = vmatprep.subr.mxu0 0.0
        %1559 = vmatpush2.msra.mxu0 0.0
        %1560 = vmatprep.subr.mxu0 0.0
        %1561 = vmatpush2.msra.mxu0 0.0
        %1562 = vmatprep.subr.mxu0 0.0
        %1563 = vmatpush2.msra.mxu0 0.0
        %1564 = vmatprep.subr.mxu0 0.0
        %1565 = vmatpush2.msra.mxu0 0.0
        %1566 = vmatprep.subr.mxu0 0.0
        %1567 = vmatpush2.msra.mxu0 0.0
        %1568 = vmatprep.subr.mxu0 0.0
        %1569 = vmatpush2.msra.mxu0 0.0
        %1570 = vmatprep.subr.mxu0 0.0
        %1571 = vmatpush2.msra.mxu0 0.0
        %1572 = vmatprep.subr.mxu0 0.0
        %1573 = vmatpush2.msra.mxu0 0.0
        %1574 = vmatprep.subr.mxu0 0.0
        %1575 = vmatpush2.msra.mxu0 0.0
        %1576 = vmatprep.subr.mxu0 0.0
        %1577 = vmatpush2.msra.mxu0 0.0
        %1578 = vmatprep.subr.mxu0 0.0
        %1579 = vmatpush2.msra.mxu0 0.0
        %1580 = vmatprep.subr.mxu0 0.0
        %1581 = vmatpush2.msra.mxu0 0.0
        %1582 = vmatprep.subr.mxu0 0.0
        %1583 = vmatpush2.msra.mxu0 0.0
        %1584 = vmatprep.subr.mxu0 0.0
        %1585 = vmatpush2.msra.mxu0 0.0
        %1586 = vmatprep.mubr.f32.mxu0 0.0
        %1587 = vmatmul.mubr.f32.gmra.mxu0 %v1443
        %v1588 = vpop.f32.mrf.mxu0
        %v1589 = vadd.f32 0.0, %v1588
        %v1590 = vpop.f32.mrf.mxu0
        %1591 = vdwg.mxu0
        %v1592 = vadd.f32 %v1419, %v1518
        %v1593 = vadd.f32 %v1420, %v1520
        %v1594 = vadd.f32 %v1421, %v1589
        %v1595 = vld [vmem:[%s210] sm:$0xff]
        %v1596 = vld [vmem:[%s210 + $0x8] sm:$0xff]
        %s1597 = scalar_lea.vmem %s214, 64
        %v1598 = vld [vmem:[%s1597] sm:$0xff]
        %v1601 = vcombine.high %v1595, %v1595
        %v1602 = vcombine.high %v1596, %v1596
        %1603 = vrot.lane.b32.xlu0 %v1595, 90
        %v1604 = vpop.permute.xlu0 %1603
        %1605 = vrot.lane.b32.xlu0 %v1601, 90
        %v1606 = vpop.permute.xlu0 %1605
        %1607 = vrot.lane.b32.xlu0 %v1596, 90
        %v1608 = vpop.permute.xlu0 %1607
        %1609 = vrot.lane.b32.xlu0 %v1602, 90
        %v1610 = vpop.permute.xlu0 %1609
        %vm1611 = vcmask 736256
        %v1612 = vsel %vm1611, %v1604, %v1606
        %v1613 = vsel %vm1611, %v1606, %v1608
        %v1614 = vsel %vm1611, %v1608, %v1610
        %v1616 = vsel %vm229, %v1598, 0
        %v1618 = vsel %vm233, %v1612, 0
        %v1620 = vsel %vm233, %v1613, 0
        %v1622 = vsel %vm233, %v1614, 0
        %1624 = vmatprep.subr.mxu0 0.0
        %1625 = vmatpush1.msra.mxu0 0.0
        %1626 = vmatprep.subr.mxu0 0.0
        %1627 = vmatpush1.msra.mxu0 0.0
        %1628 = vmatprep.subr.mxu0 0.0
        %1629 = vmatpush1.msra.mxu0 0.0
        %1630 = vmatprep.subr.mxu0 0.0
        %1631 = vmatpush1.msra.mxu0 0.0
        %1632 = vmatprep.subr.mxu0 0.0
        %1633 = vmatpush1.msra.mxu0 0.0
        %1634 = vmatprep.subr.mxu0 0.0
        %1635 = vmatpush1.msra.mxu0 0.0
        %1636 = vmatprep.subr.mxu0 0.0
        %1637 = vmatpush1.msra.mxu0 0.0
        %1638 = vmatprep.subr.mxu0 0.0
        %1639 = vmatpush1.msra.mxu0 0.0
        %1640 = vmatprep.subr.mxu0 0.0
        %1641 = vmatpush1.msra.mxu0 0.0
        %1642 = vmatprep.subr.mxu0 0.0
        %1643 = vmatpush1.msra.mxu0 0.0
        %1644 = vmatprep.subr.mxu0 0.0
        %1645 = vmatpush1.msra.mxu0 0.0
        %1646 = vmatprep.subr.mxu0 0.0
        %1647 = vmatpush1.msra.mxu0 0.0
        %1648 = vmatprep.subr.mxu0 0.0
        %1649 = vmatpush1.msra.mxu0 0.0
        %1650 = vmatprep.subr.mxu0 0.0
        %1651 = vmatpush1.msra.mxu0 0.0
        %1652 = vmatprep.subr.mxu0 0.0
        %1653 = vmatpush1.msra.mxu0 0.0
        %1654 = vmatprep.subr.mxu0 %v1620
        %1655 = vmatpush1.msra.mxu0 %v1618
        %1656 = vmatprep.subr.mxu0 0.0
        %1657 = vmatpush2.msra.mxu0 0.0
        %1658 = vmatprep.subr.mxu0 0.0
        %1659 = vmatpush2.msra.mxu0 0.0
        %1660 = vmatprep.subr.mxu0 0.0
        %1661 = vmatpush2.msra.mxu0 0.0
        %1662 = vmatprep.subr.mxu0 0.0
        %1663 = vmatpush2.msra.mxu0 0.0
        %1664 = vmatprep.subr.mxu0 0.0
        %1665 = vmatpush2.msra.mxu0 0.0
        %1666 = vmatprep.subr.mxu0 0.0
        %1667 = vmatpush2.msra.mxu0 0.0
        %1668 = vmatprep.subr.mxu0 0.0
        %1669 = vmatpush2.msra.mxu0 0.0
        %1670 = vmatprep.subr.mxu0 0.0
        %1671 = vmatpush2.msra.mxu0 0.0
        %1672 = vmatprep.subr.mxu0 0.0
        %1673 = vmatpush2.msra.mxu0 0.0
        %1674 = vmatprep.subr.mxu0 0.0
        %1675 = vmatpush2.msra.mxu0 0.0
        %1676 = vmatprep.subr.mxu0 0.0
        %1677 = vmatpush2.msra.mxu0 0.0
        %1678 = vmatprep.subr.mxu0 0.0
        %1679 = vmatpush2.msra.mxu0 0.0
        %1680 = vmatprep.subr.mxu0 0.0
        %1681 = vmatpush2.msra.mxu0 0.0
        %1682 = vmatprep.subr.mxu0 0.0
        %1683 = vmatpush2.msra.mxu0 0.0
        %1684 = vmatprep.subr.mxu0 0.0
        %1685 = vmatpush2.msra.mxu0 0.0
        %1686 = vmatprep.subr.mxu0 0.0
        %1687 = vmatpush2.msra.mxu0 0.0
        %1688 = vmatprep.mubr.f32.mxu0 0.0
        %1689 = vmatmul.mubr.f32.gmra.mxu0 %v1616
        %v1690 = vpop.f32.mrf.mxu0
        %v1691 = vadd.f32 0.0, %v1690
        %v1692 = vpop.f32.mrf.mxu0
        %v1693 = vadd.f32 0.0, %v1692
        %1694 = vdwg.mxu0
        %1695 = vmatprep.subr.mxu0 0.0
        %1696 = vmatpush1.msra.mxu0 0.0
        %1697 = vmatprep.subr.mxu0 0.0
        %1698 = vmatpush1.msra.mxu0 0.0
        %1699 = vmatprep.subr.mxu0 0.0
        %1700 = vmatpush1.msra.mxu0 0.0
        %1701 = vmatprep.subr.mxu0 0.0
        %1702 = vmatpush1.msra.mxu0 0.0
        %1703 = vmatprep.subr.mxu0 0.0
        %1704 = vmatpush1.msra.mxu0 0.0
        %1705 = vmatprep.subr.mxu0 0.0
        %1706 = vmatpush1.msra.mxu0 0.0
        %1707 = vmatprep.subr.mxu0 0.0
        %1708 = vmatpush1.msra.mxu0 0.0
        %1709 = vmatprep.subr.mxu0 0.0
        %1710 = vmatpush1.msra.mxu0 0.0
        %1711 = vmatprep.subr.mxu0 0.0
        %1712 = vmatpush1.msra.mxu0 0.0
        %1713 = vmatprep.subr.mxu0 0.0
        %1714 = vmatpush1.msra.mxu0 0.0
        %1715 = vmatprep.subr.mxu0 0.0
        %1716 = vmatpush1.msra.mxu0 0.0
        %1717 = vmatprep.subr.mxu0 0.0
        %1718 = vmatpush1.msra.mxu0 0.0
        %1719 = vmatprep.subr.mxu0 0.0
        %1720 = vmatpush1.msra.mxu0 0.0
        %1721 = vmatprep.subr.mxu0 0.0
        %1722 = vmatpush1.msra.mxu0 0.0
        %1723 = vmatprep.subr.mxu0 0.0
        %1724 = vmatpush1.msra.mxu0 0.0
        %1725 = vmatprep.subr.mxu0 0.0
        %1726 = vmatpush1.msra.mxu0 %v1622
        %1727 = vmatprep.subr.mxu0 0.0
        %1728 = vmatpush2.msra.mxu0 0.0
        %1729 = vmatprep.subr.mxu0 0.0
        %1730 = vmatpush2.msra.mxu0 0.0
        %1731 = vmatprep.subr.mxu0 0.0
        %1732 = vmatpush2.msra.mxu0 0.0
        %1733 = vmatprep.subr.mxu0 0.0
        %1734 = vmatpush2.msra.mxu0 0.0
        %1735 = vmatprep.subr.mxu0 0.0
        %1736 = vmatpush2.msra.mxu0 0.0
        %1737 = vmatprep.subr.mxu0 0.0
        %1738 = vmatpush2.msra.mxu0 0.0
        %1739 = vmatprep.subr.mxu0 0.0
        %1740 = vmatpush2.msra.mxu0 0.0
        %1741 = vmatprep.subr.mxu0 0.0
        %1742 = vmatpush2.msra.mxu0 0.0
        %1743 = vmatprep.subr.mxu0 0.0
        %1744 = vmatpush2.msra.mxu0 0.0
        %1745 = vmatprep.subr.mxu0 0.0
        %1746 = vmatpush2.msra.mxu0 0.0
        %1747 = vmatprep.subr.mxu0 0.0
        %1748 = vmatpush2.msra.mxu0 0.0
        %1749 = vmatprep.subr.mxu0 0.0
        %1750 = vmatpush2.msra.mxu0 0.0
        %1751 = vmatprep.subr.mxu0 0.0
        %1752 = vmatpush2.msra.mxu0 0.0
        %1753 = vmatprep.subr.mxu0 0.0
        %1754 = vmatpush2.msra.mxu0 0.0
        %1755 = vmatprep.subr.mxu0 0.0
        %1756 = vmatpush2.msra.mxu0 0.0
        %1757 = vmatprep.subr.mxu0 0.0
        %1758 = vmatpush2.msra.mxu0 0.0
        %1759 = vmatprep.mubr.f32.mxu0 0.0
        %1760 = vmatmul.mubr.f32.gmra.mxu0 %v1616
        %v1761 = vpop.f32.mrf.mxu0
        %v1762 = vadd.f32 0.0, %v1761
        %v1763 = vpop.f32.mrf.mxu0
        %1764 = vdwg.mxu0
        %v1765 = vadd.f32 %v1592, %v1691
        %v1766 = vadd.f32 %v1593, %v1693
        %v1767 = vadd.f32 %v1594, %v1762
        %1768 = vst [vmem:[%s205] sm:$0xff] %v1765
        %1769 = vst [vmem:[%s205 + $0x8] sm:$0xff] %v1766
        %1770 = vst [vmem:[%s205 + $0x10] sm:$0xff] %v1767
        %s1771 = sand.u32 %s117, 1
        %s1772 = scalar_lea.sflag [#allocation3], %s1771
        %s1773 = sand.u32 %s117, 1
        %s1774 = smul.addr %s1773, 24
        %s1775 = scalar_lea.vmem [#allocation2], %s1774
        // Predicated region
        $region33: #{tpu_custom_call.1} parent=31 // pred_check
          %p1776 = pneg %p127
        $region34: #{tpu_custom_call.1} parent=31 // pred_check_branch
          %1778 = sbr.rel (%p1776) target = $region36
        $region35: #{tpu_custom_call.1} parent=31 // pred_region
          %s1780 = ssub.s32 384, 384
          %1781 = vsyncadd %s1772, %s1780
          %s1782 = smul.addr %s22, 3
          %s1783 = smul.addr %s21, 3
          %s1784 = sadd.s32 %s1782, %s1783
          %s1785 = smul.addr %s1784, 128
          %s1786 = scalar_lea.hbm %s3, %s1785
          %s1788 = sshll.u32 %s1775, 4
          %s1789 = int_to_ptr.vmem [resolvable:$true] %s1788
          %1791 = dma.vmem_to_hbm [thread:$0]  %s1789, 384, %s1786, %s1772
        $region36: #{tpu_custom_call.1} parent=31 // pred_fallthru
          _
      $region32: #{tpu_custom_call.1} parent=5 // pred_fallthru
        _
      %p1792 = scmp.le.s32.totalorder 2, %s12
      // Predicated region
      $region37: #{tpu_custom_call.1} parent=5 // pred_check
        %p1793 = pneg %p1792
      $region38: #{tpu_custom_call.1} parent=5 // pred_check_branch
        %1795 = sbr.rel (%p1793) target = $region40
      $region39: #{tpu_custom_call.1} parent=5 // pred_region
        %s1796 = ssub.s32 %s12, 2
        // Predicated region
        $region41: #{tpu_custom_call.1} parent=39 // pred_check
          %p1797 = pneg %p133
        $region42: #{tpu_custom_call.1} parent=39 // pred_check_branch
          %1799 = sbr.rel (%p1797) target = $region44
        $region43: #{tpu_custom_call.1} parent=39 // pred_region
          %s1800 = sand.u32 %s118, 1
          %s1801 = scalar_lea.sflag [#allocation3], %s1800
          %s1802 = sand.u32 %s118, 1
          %s1803 = smul.addr %s1802, 24
          %s1804 = scalar_lea.vmem [#allocation2], %s1803
          %1805 = dma.done %s1801, 384
        $region44: #{tpu_custom_call.1} parent=39 // pred_fallthru
          _
      $region40: #{tpu_custom_call.1} parent=5 // pred_fallthru
        _
    $region6: #{tpu_custom_call.1} parent=1 // loop_footer
      %s16 = sadd.s32 1, %s12
    $region7: #{tpu_custom_call.1} parent=1 // loop_footer_branch
      %11 = sbr.rel target = $region3
    $region8: #{tpu_custom_call.1} parent=1 // loop_exit
      _
    %1806 = vsyncpa [#allocation3], 1
    %s1807 = scalar_lea.sflag [#allocation3], 1
    %1808 = vsyncpa %s1807, 1

</llo_original>
